<compile_context>
chip_gen: v5e
topology: v5e:2x2
jax: 0.10.0
libtpu: 0.0.40
codegen_flags: <defaults>
</compile_context>

<pallas_src>
import math
from functools import partial

import jax
import jax.numpy as jnp
from jax import lax
from jax.experimental import pallas as pl
from jax.experimental.pallas import tpu as pltpu

N_HEADS = 8        # TransformerEncoderLayer(emb_dim, 8, hid_dim, dropout)
LN_EPS = 1e-5      # PyTorch LayerNorm default eps


def _layer_norm(y, w, b):
    """LayerNorm over the last dim; all math in f32 (v5e-safe)."""
    mu = jnp.mean(y, axis=-1, keepdims=True)
    var = jnp.mean((y - mu) ** 2, axis=-1, keepdims=True)
    return (y - mu) * lax.rsqrt(var + LN_EPS) * w + b


# ------------------------------ fused kernel --------------------------------

def fused_encoder_kernel(x_in_ref,
                         wqkv_ref, wo_ref, w1_ref, w2_ref,
                         vec_ref, fin_ref,
                         out_ref,
                         x_state, attn_buf,
                         *, n_heads, bc, seq):
    """Whole encoder stack.

    Grid = (batch_chunks ["parallel"], n_layers ["arbitrary", innermost]).
    x_in_ref / out_ref : (bc, S, E) batch-major block of this batch chunk.
    wqkv/wo/w1/w2      : per-layer streamed weight matrices (bf16).
    vec_ref            : (8, W) packed per-layer vectors
                         [bqkv | bo | ln1w | ln1b | b1 | b2 | ln2w | ln2b].
    fin_ref            : (2, E) final-LayerNorm [weight; bias], resident.
    x_state            : (bc*S, E) f32 scratch, activation carried across layers.
    attn_buf           : (bc*S, E) bf16 scratch, attention output slab.
    """
    layer = pl.program_id(1)
    n_layers = pl.num_programs(1)
    E = wqkv_ref.shape[0]
    hid = w1_ref.shape[1]
    dh = E // n_heads
    rows = bc * seq
    mxu = wqkv_ref.dtype          # bf16 (or f32) matmul-operand dtype

    # Packed per-layer vectors (f32).
    vec = vec_ref[...]
    bqkv = vec[0:1, :3 * E]       # Q part already pre-scaled by 1/sqrt(dh)
    bo = vec[1:2, :E]
    ln1w = vec[2:3, :E]
    ln1b = vec[3:4, :E]
    b1 = vec[4:5, :hid]
    b2 = vec[5:6, :E]
    ln2w = vec[6:7, :E]
    ln2b = vec[7:8, :E]

    # Layer 0 of this batch chunk: load the (bc, S, E) input as (rows, E).
    @pl.when(layer == 0)
    def _load_input():
        x_state[...] = x_in_ref[...].reshape(rows, E)

    x = x_state[...]                                             # (rows, E) f32

    # ---- fused QKV projection (bf16 MXU operands, f32 accum) ----------------
    # 1/sqrt(dh) is folded into the Q columns of wqkv/bqkv by the wrapper.
    qkv = jnp.dot(x.astype(mxu), wqkv_ref[...],
                  preferred_element_type=jnp.float32) + bqkv     # (rows, 3E)

    # ---- multi-head self-attention -------------------------------------------
    # Heads unrolled statically; each head is a leading-batch 3-D einsum with
    # bf16 operands / f32 accumulation; outputs land in a bf16 (rows, E) slab.
    for h in range(n_heads):
        c = h * dh
        qh = qkv[:, c:c + dh].reshape(bc, seq, dh).astype(mxu)
        kh = qkv[:, E + c:E + c + dh].reshape(bc, seq, dh).astype(mxu)
        vh = qkv[:, 2 * E + c:2 * E + c + dh].reshape(bc, seq, dh).astype(mxu)
        s = jnp.einsum('bqd,bkd->bqk', qh, kh,
                       preferred_element_type=jnp.float32)       # (bc, S, S) f32
        s = s - jnp.max(s, axis=-1, keepdims=True)
        p = jnp.exp(s)
        p = p * pl.reciprocal(jnp.sum(p, axis=-1, keepdims=True), approx=True)
        ao = jnp.einsum('bqk,bkd->bqd', p.astype(mxu), vh,
                        preferred_element_type=jnp.float32)      # (bc, S, dh)
        attn_buf[:, c:c + dh] = ao.reshape(rows, dh).astype(mxu)

    attn = jnp.dot(attn_buf[...], wo_ref[...],
                   preferred_element_type=jnp.float32) + bo      # (rows, E) f32

    # ---- residual + norm1 (dropout is eval-mode identity) --------------------
    x1 = _layer_norm(x + attn, ln1w, ln1b)

    # ---- feed-forward (ReLU) --------------------------------------------------
    ff = jnp.dot(x1.astype(mxu), w1_ref[...],
                 preferred_element_type=jnp.float32) + b1
    ff = jnp.maximum(ff, 0.0)
    ff = jnp.dot(ff.astype(mxu), w2_ref[...],
                 preferred_element_type=jnp.float32) + b2

    # ---- residual + norm2, carry activation to the next layer -----------------
    y = _layer_norm(x1 + ff, ln2w, ln2b)
    x_state[...] = y

    # Last layer: final encoder LayerNorm, single lane-dense block store.
    @pl.when(layer == n_layers - 1)
    def _write_output():
        z = _layer_norm(y, fin_ref[0:1, :], fin_ref[1:2, :])
        out_ref[...] = z.reshape(bc, seq, E)


# ------------------------------ wrapper --------------------------------------

def trans_encoder_forward(src, params, mxu_dtype=jnp.bfloat16, batch_chunks=None):
    """src: (S, B, E) f32 seq-first (PyTorch layout).  Returns (S, B, E) f32."""
    S, B, E = src.shape
    L = params["wqkv"].shape[0]
    hid = params["w1"].shape[-1]
    H = N_HEADS
    assert E % H == 0
    dh = E // H

    # Batch-parallel grid axis (useful on v7x's 2 TensorCores).  Single-TC
    # parts can pass batch_chunks=1 to avoid streaming weights per chunk.
    if batch_chunks is None:
        batch_chunks = 2 if (B % 2 == 0 and B >= 2) else 1
    assert B % batch_chunks == 0
    bc = B // batch_chunks

    # Fold the 1/sqrt(dh) attention scale into the Q columns (free at runtime).
    scale = 1.0 / math.sqrt(dh)
    wqkv = params["wqkv"].at[:, :, :E].multiply(scale).astype(mxu_dtype)
    bqkv = params["bqkv"].at[:, :, :E].multiply(scale)
    wo = params["wo"].astype(mxu_dtype)
    w1 = params["w1"].astype(mxu_dtype)
    w2 = params["w2"].astype(mxu_dtype)

    # Pack the 8 tiny per-layer vectors into one (L, 8, W) slab -> 1 DMA/step.
    W = max(3 * E, hid, E)

    def pad_to(v):                               # v: (L, 1, width)
        return jnp.pad(v, ((0, 0), (0, 0), (0, W - v.shape[-1])))

    vecs = jnp.concatenate(
        [pad_to(bqkv), pad_to(params["bo"]),
         pad_to(params["ln1w"]), pad_to(params["ln1b"]),
         pad_to(params["b1"]), pad_to(params["b2"]),
         pad_to(params["ln2w"]), pad_to(params["ln2b"])], axis=1)   # (L, 8, W)

    fin = jnp.concatenate([params["normw"], params["normb"]], axis=0)  # (2, E)

    # Batch-major activation layout (lane dim E stays last; cheap XLA copy).
    x_bse = jnp.transpose(src, (1, 0, 2)).astype(jnp.float32)          # (B, S, E)

    in_specs = [
        pl.BlockSpec((bc, S, E), lambda b, l: (b, 0, 0)),              # input chunk
        pl.BlockSpec((None, E, 3 * E), lambda b, l: (l, 0, 0)),        # wqkv
        pl.BlockSpec((None, E, E), lambda b, l: (l, 0, 0)),            # wo
        pl.BlockSpec((None, E, hid), lambda b, l: (l, 0, 0)),          # w1
        pl.BlockSpec((None, hid, E), lambda b, l: (l, 0, 0)),          # w2
        pl.BlockSpec((None, 8, W), lambda b, l: (l, 0, 0)),            # packed vecs
        pl.BlockSpec((2, E), lambda b, l: (0, 0)),                     # final norm
    ]
    out_specs = pl.BlockSpec((bc, S, E), lambda b, l: (b, 0, 0))

    # --- VMEM budget (double-buffered weight stream + resident activations) ---
    wsize = jnp.dtype(mxu_dtype).itemsize
    per_layer_w = (E * 3 * E + E * E + 2 * E * hid) * wsize + 8 * W * 4
    rows = bc * S
    resident = 2 * (bc * S * E * 4) + 2 * E * 4            # in + out blocks + fin
    scratch = rows * E * 4 + rows * E * wsize               # x_state + attn_buf
    live = 2 * (rows * 3 * E + rows * hid + bc * S * S) * 4  # qkv/ff/scores temps
    budget = 2 * per_layer_w + 2 * resident + scratch + live
    try:
        phys = int(pltpu.get_tpu_info().vmem_capacity_bytes)
    except Exception:
        phys = 64 * 1024 * 1024                              # v7x-safe fallback
    vmem_limit = int(min(max(32 * 1024 * 1024, 2 * budget),
                         phys - 8 * 1024 * 1024))

    kernel = partial(fused_encoder_kernel, n_heads=H, bc=bc, seq=S)
    out = pl.pallas_call(
        kernel,
        out_shape=jax.ShapeDtypeStruct((B, S, E), jnp.float32),
        grid=(batch_chunks, L),
        in_specs=in_specs,
        out_specs=out_specs,
        scratch_shapes=[pltpu.VMEM((rows, E), jnp.float32),   # carried activation
                        pltpu.VMEM((rows, E), mxu_dtype)],    # attention slab
        compiler_params=pltpu.CompilerParams(
            dimension_semantics=("parallel", "arbitrary"),    # layers sequential
            vmem_limit_bytes=vmem_limit),
    )(x_bse, wqkv, wo, w1, w2, vecs, fin)

    return jnp.transpose(out, (1, 0, 2))                      # back to (S, B, E)


# ------------------------------ params / reference ---------------------------

def init_params(key, emb_dim, hid_dim, n_layers):
    def nrm(k, shape, s=0.05):
        return (s * jax.random.normal(k, shape)).astype(jnp.float32)

    L = n_layers
    ks = jax.random.split(key, 14)
    return dict(
        wqkv=nrm(ks[0], (L, emb_dim, 3 * emb_dim)),
        bqkv=nrm(ks[1], (L, 1, 3 * emb_dim)),
        wo=nrm(ks[2], (L, emb_dim, emb_dim)),
        bo=nrm(ks[3], (L, 1, emb_dim)),
        ln1w=1.0 + nrm(ks[4], (L, 1, emb_dim), 0.01),
        ln1b=nrm(ks[5], (L, 1, emb_dim), 0.01),
        w1=nrm(ks[6], (L, emb_dim, hid_dim)),
        b1=nrm(ks[7], (L, 1, hid_dim)),
        w2=nrm(ks[8], (L, hid_dim, emb_dim)),
        b2=nrm(ks[9], (L, 1, emb_dim)),
        ln2w=1.0 + nrm(ks[10], (L, 1, emb_dim), 0.01),
        ln2b=nrm(ks[11], (L, 1, emb_dim), 0.01),
        normw=1.0 + nrm(ks[12], (1, emb_dim), 0.01),
        normb=nrm(ks[13], (1, emb_dim), 0.01),
    )


def ref_forward(src, params, mxu_dtype=jnp.float32):
    """Pure-JAX reference.  mxu_dtype=f32 -> exact module semantics;
    mxu_dtype=bf16 -> emulates the kernel's bf16-operand matmuls/einsums."""
    def mm(a, w):
        return jnp.dot(a.astype(mxu_dtype), w.astype(mxu_dtype),
                       preferred_element_type=jnp.float32)

    x = jnp.transpose(src, (1, 0, 2)).astype(jnp.float32)        # (B, S, E)
    B, S, E = x.shape
    H, dh = N_HEADS, E // N_HEADS
    L = params["wqkv"].shape[0]
    scale = 1.0 / math.sqrt(dh)
    xf = x.reshape(B * S, E)
    for l in range(L):
        qkv = mm(xf, params["wqkv"][l]) + params["bqkv"][l]
        q = (qkv[:, :E] * scale).reshape(B, S, H, dh).astype(mxu_dtype)
        k = qkv[:, E:2 * E].reshape(B, S, H, dh).astype(mxu_dtype)
        v = qkv[:, 2 * E:].reshape(B, S, H, dh).astype(mxu_dtype)
        s = jnp.einsum("bqhd,bkhd->bhqk", q, k,
                       preferred_element_type=jnp.float32)
        p = jax.nn.softmax(s, axis=-1)
        a = jnp.einsum("bhqk,bkhd->bqhd", p.astype(mxu_dtype), v,
                       preferred_element_type=jnp.float32).reshape(B * S, E)
        a = mm(a, params["wo"][l]) + params["bo"][l]
        x1 = _layer_norm(xf + a, params["ln1w"][l], params["ln1b"][l])
        ff = jnp.maximum(mm(x1, params["w1"][l]) + params["b1"][l], 0.0)
        ff = mm(ff, params["w2"][l]) + params["b2"][l]
        xf = _layer_norm(x1 + ff, params["ln2w"][l], params["ln2b"][l])
    xf = _layer_norm(xf, params["normw"], params["normb"])
    return jnp.transpose(xf.reshape(B, S, E), (1, 0, 2))


# ------------------------------ main -----------------------------------------

if __name__ == "__main__":
    S, B = 8, 2
    emb_dim, hid_dim, n_layers = 32, 64, 2

    key = jax.random.PRNGKey(0)
    kp, kx = jax.random.split(key)
    params = init_params(kp, emb_dim, hid_dim, n_layers)
    src = jax.random.normal(kx, (S, B, emb_dim), dtype=jnp.float32)

    out = jax.block_until_ready(trans_encoder_forward(src, params))
    assert out.shape == (S, B, emb_dim), out.shape

    # Tight check vs a reference that mirrors the kernel's bf16 MXU math.
    ref_bf16 = ref_forward(src, params, mxu_dtype=jnp.bfloat16)
    err_bf16 = float(jnp.max(jnp.abs(out - ref_bf16)))
    assert jnp.allclose(out, ref_bf16, atol=5e-3, rtol=5e-3), f"bf16-ref err={err_bf16}"

    # Looser check vs pure-f32 module semantics (bf16 MXU operands trade a
    # little precision for throughput).
    ref_f32 = ref_forward(src, params, mxu_dtype=jnp.float32)
    err_f32 = float(jnp.max(jnp.abs(out - ref_f32)))
    assert jnp.allclose(out, ref_f32, atol=3e-2, rtol=3e-2), f"f32-ref err={err_f32}"

    print("KERNEL_OK")
</pallas_src>

<mosaic_0001>
module attributes {stable_mosaic.version = 11 : i64} {
  func.func @fused_encoder_kernel(%arg0: i32, %arg1: i32, %arg2: memref<1x8x32xf32, #tpu.memory_space<vmem>>, %arg3: memref<1x32x96xbf16, #tpu.memory_space<vmem>>, %arg4: memref<1x32x32xbf16, #tpu.memory_space<vmem>>, %arg5: memref<1x32x64xbf16, #tpu.memory_space<vmem>>, %arg6: memref<1x64x32xbf16, #tpu.memory_space<vmem>>, %arg7: memref<1x8x96xf32, #tpu.memory_space<vmem>>, %arg8: memref<2x32xf32, #tpu.memory_space<vmem>>, %arg9: memref<1x8x32xf32, #tpu.memory_space<vmem>>, %arg10: memref<8x32xf32, #tpu.memory_space<vmem>>, %arg11: memref<8x32xbf16, #tpu.memory_space<vmem>>) attributes {dimension_semantics = [#tpu.dimension_semantics<parallel>, #tpu.dimension_semantics<arbitrary>], iteration_bounds = array<i64: 2, 2>, scalar_prefetch = 0 : i64, scratch_operands = 2 : i64, tpu.core_type = #tpu.core_type<tc>, window_params = [{transform_indices = @transform_0, window_bounds = array<i64: 1, 8, 32>}, {transform_indices = @transform_1, window_bounds = array<i64: 1, 32, 96>}, {transform_indices = @transform_2, window_bounds = array<i64: 1, 32, 32>}, {transform_indices = @transform_3, window_bounds = array<i64: 1, 32, 64>}, {transform_indices = @transform_4, window_bounds = array<i64: 1, 64, 32>}, {transform_indices = @transform_5, window_bounds = array<i64: 1, 8, 96>}, {pipeline_mode = #tpu.pipeline_mode<synchronous>, transform_indices = @transform_6, window_bounds = array<i64: 2, 32>}, {transform_indices = @transform_7, window_bounds = array<i64: 1, 8, 32>}]} {
    %c0 = arith.constant 0 : index
    %c0_0 = arith.constant 0 : index
    %c0_1 = arith.constant 0 : index
    %0 = vector.load %arg7[%c0, %c0_0, %c0_1] : memref<1x8x96xf32, #tpu.memory_space<vmem>>, vector<1x8x96xf32>
    %1 = vector.shape_cast %0 : vector<1x8x96xf32> to vector<8x96xf32>
    %2 = vector.extract_strided_slice %1 {offsets = [0, 0], sizes = [1, 96], strides = [1, 1]} : vector<8x96xf32> to vector<1x96xf32>
    %3 = vector.extract_strided_slice %1 {offsets = [1, 0], sizes = [1, 32], strides = [1, 1]} : vector<8x96xf32> to vector<1x32xf32>
    %4 = vector.extract_strided_slice %1 {offsets = [2, 0], sizes = [1, 32], strides = [1, 1]} : vector<8x96xf32> to vector<1x32xf32>
    %5 = vector.extract_strided_slice %1 {offsets = [3, 0], sizes = [1, 32], strides = [1, 1]} : vector<8x96xf32> to vector<1x32xf32>
    %6 = vector.extract_strided_slice %1 {offsets = [4, 0], sizes = [1, 64], strides = [1, 1]} : vector<8x96xf32> to vector<1x64xf32>
    %7 = vector.extract_strided_slice %1 {offsets = [5, 0], sizes = [1, 32], strides = [1, 1]} : vector<8x96xf32> to vector<1x32xf32>
    %8 = vector.extract_strided_slice %1 {offsets = [6, 0], sizes = [1, 32], strides = [1, 1]} : vector<8x96xf32> to vector<1x32xf32>
    %9 = vector.extract_strided_slice %1 {offsets = [7, 0], sizes = [1, 32], strides = [1, 1]} : vector<8x96xf32> to vector<1x32xf32>
    %c0_i32 = arith.constant 0 : i32
    %10 = arith.cmpi eq, %arg1, %c0_i32 : i32
    %11 = arith.extui %10 : i1 to i32
    %c0_i32_2 = arith.constant 0 : i32
    %12 = arith.cmpi ne, %11, %c0_i32_2 : i32
    scf.if %12 {
      %c0_77 = arith.constant 0 : index
      %c0_78 = arith.constant 0 : index
      %c0_79 = arith.constant 0 : index
      %290 = vector.load %arg2[%c0_77, %c0_78, %c0_79] : memref<1x8x32xf32, #tpu.memory_space<vmem>>, vector<1x8x32xf32>
      %291 = vector.shape_cast %290 : vector<1x8x32xf32> to vector<8x32xf32>
      %c0_80 = arith.constant 0 : index
      %c0_81 = arith.constant 0 : index
      %292 = vector.load %arg10[%c0_80, %c0_81] : memref<8x32xf32, #tpu.memory_space<vmem>>, vector<8x32xf32>
      tpu.vector_store %arg10[%c0_80, %c0_81], %291 {strides = array<i32>} : memref<8x32xf32, #tpu.memory_space<vmem>>, vector<8x32xf32>,
    } else {
    }
    %c0_3 = arith.constant 0 : index
    %c0_4 = arith.constant 0 : index
    %13 = vector.load %arg10[%c0_3, %c0_4] : memref<8x32xf32, #tpu.memory_space<vmem>>, vector<8x32xf32>
    %14 = arith.truncf %13 : vector<8x32xf32> to vector<8x32xbf16>
    %c0_5 = arith.constant 0 : index
    %c0_6 = arith.constant 0 : index
    %c0_7 = arith.constant 0 : index
    %15 = vector.load %arg3[%c0_5, %c0_6, %c0_7] : memref<1x32x96xbf16, #tpu.memory_space<vmem>>, vector<1x32x96xbf16>
    %16 = vector.shape_cast %15 : vector<1x32x96xbf16> to vector<32x96xbf16>
    %cst = arith.constant dense<0.000000e+00> : vector<8x96xf32>
    %17 = tpu.matmul %14, %16, %cst {dimension_numbers = #tpu.dot_dimension_numbers<[1], [0], [0], [1], [0, 0, 1, 1], [], []>} : vector<8x32xbf16>, vector<32x96xbf16>, vector<8x96xf32> -> vector<8x96xf32>
    %18 = vector.broadcast %2 : vector<1x96xf32> to vector<8x96xf32>
    %19 = arith.addf %17, %18 : vector<8x96xf32>
    %20 = vector.extract_strided_slice %19 {offsets = [0, 0], sizes = [8, 4], strides = [1, 1]} : vector<8x96xf32> to vector<8x4xf32>
    %21 = vector.shape_cast %20 : vector<8x4xf32> to vector<1x8x4xf32>
    %22 = arith.truncf %21 : vector<1x8x4xf32> to vector<1x8x4xbf16>
    %23 = vector.extract_strided_slice %19 {offsets = [0, 32], sizes = [8, 4], strides = [1, 1]} : vector<8x96xf32> to vector<8x4xf32>
    %24 = vector.shape_cast %23 : vector<8x4xf32> to vector<1x8x4xf32>
    %25 = arith.truncf %24 : vector<1x8x4xf32> to vector<1x8x4xbf16>
    %26 = vector.extract_strided_slice %19 {offsets = [0, 64], sizes = [8, 4], strides = [1, 1]} : vector<8x96xf32> to vector<8x4xf32>
    %27 = vector.shape_cast %26 : vector<8x4xf32> to vector<1x8x4xf32>
    %28 = arith.truncf %27 : vector<1x8x4xf32> to vector<1x8x4xbf16>
    "tpu.trace_start"() <{level = 10 : i32, message = "bqd,bkd->bqk"}> : () -> ()
    %cst_8 = arith.constant dense<0.000000e+00> : vector<1x8x8xf32>
    %29 = tpu.matmul %22, %25, %cst_8 {dimension_numbers = #tpu.dot_dimension_numbers<[2], [2], [1], [1], [0, 0, 0, 1, 1, 1], [0], [0]>} : vector<1x8x4xbf16>, vector<1x8x4xbf16>, vector<1x8x8xf32> -> vector<1x8x8xf32>
    "tpu.trace_stop"() : () -> ()
    %cst_9 = arith.constant dense<0xFF800000> : vector<1x8xf32>
    %30 = vector.multi_reduction <maximumf>, %29, %cst_9 [2] : vector<1x8x8xf32> to vector<1x8xf32>
    %31 = vector.shape_cast %30 : vector<1x8xf32> to vector<1x8x1xf32>
    %32 = vector.broadcast %31 : vector<1x8x1xf32> to vector<1x8x8xf32>
    %33 = arith.subf %29, %32 : vector<1x8x8xf32>
    %34 = math.exp %33 : vector<1x8x8xf32>
    %cst_10 = arith.constant dense<0.000000e+00> : vector<1x8xf32>
    %35 = vector.multi_reduction <add>, %34, %cst_10 [2] : vector<1x8x8xf32> to vector<1x8xf32>
    %36 = vector.shape_cast %35 : vector<1x8xf32> to vector<1x8x1xf32>
    %37 = tpu.reciprocal %36 {approx = true} : vector<1x8x1xf32> -> vector<1x8x1xf32>
    %38 = vector.broadcast %37 : vector<1x8x1xf32> to vector<1x8x8xf32>
    %39 = arith.mulf %34, %38 : vector<1x8x8xf32>
    %40 = arith.truncf %39 : vector<1x8x8xf32> to vector<1x8x8xbf16>
    "tpu.trace_start"() <{level = 10 : i32, message = "bqk,bkd->bqd"}> : () -> ()
    %cst_11 = arith.constant dense<0.000000e+00> : vector<1x8x4xf32>
    %41 = tpu.matmul %40, %28, %cst_11 {dimension_numbers = #tpu.dot_dimension_numbers<[2], [1], [1], [2], [0, 0, 0, 1, 1, 2], [0], [0]>} : vector<1x8x8xbf16>, vector<1x8x4xbf16>, vector<1x8x4xf32> -> vector<1x8x4xf32>
    "tpu.trace_stop"() : () -> ()
    %42 = vector.shape_cast %41 : vector<1x8x4xf32> to vector<8x4xf32>
    %43 = arith.truncf %42 : vector<8x4xf32> to vector<8x4xbf16>
    %c0_12 = arith.constant 0 : index
    %c0_13 = arith.constant 0 : index
    %44 = vector.load %arg11[%c0_12, %c0_13] : memref<8x32xbf16, #tpu.memory_space<vmem>>, vector<8x4xbf16>
    tpu.vector_store %arg11[%c0_12, %c0_13], %43 {strides = array<i32>} : memref<8x32xbf16, #tpu.memory_space<vmem>>, vector<8x4xbf16>,
    %45 = vector.extract_strided_slice %19 {offsets = [0, 4], sizes = [8, 4], strides = [1, 1]} : vector<8x96xf32> to vector<8x4xf32>
    %46 = vector.shape_cast %45 : vector<8x4xf32> to vector<1x8x4xf32>
    %47 = arith.truncf %46 : vector<1x8x4xf32> to vector<1x8x4xbf16>
    %48 = vector.extract_strided_slice %19 {offsets = [0, 36], sizes = [8, 4], strides = [1, 1]} : vector<8x96xf32> to vector<8x4xf32>
    %49 = vector.shape_cast %48 : vector<8x4xf32> to vector<1x8x4xf32>
    %50 = arith.truncf %49 : vector<1x8x4xf32> to vector<1x8x4xbf16>
    %51 = vector.extract_strided_slice %19 {offsets = [0, 68], sizes = [8, 4], strides = [1, 1]} : vector<8x96xf32> to vector<8x4xf32>
    %52 = vector.shape_cast %51 : vector<8x4xf32> to vector<1x8x4xf32>
    %53 = arith.truncf %52 : vector<1x8x4xf32> to vector<1x8x4xbf16>
    "tpu.trace_start"() <{level = 10 : i32, message = "bqd,bkd->bqk"}> : () -> ()
    %cst_14 = arith.constant dense<0.000000e+00> : vector<1x8x8xf32>
    %54 = tpu.matmul %47, %50, %cst_14 {dimension_numbers = #tpu.dot_dimension_numbers<[2], [2], [1], [1], [0, 0, 0, 1, 1, 1], [0], [0]>} : vector<1x8x4xbf16>, vector<1x8x4xbf16>, vector<1x8x8xf32> -> vector<1x8x8xf32>
    "tpu.trace_stop"() : () -> ()
    %cst_15 = arith.constant dense<0xFF800000> : vector<1x8xf32>
    %55 = vector.multi_reduction <maximumf>, %54, %cst_15 [2] : vector<1x8x8xf32> to vector<1x8xf32>
    %56 = vector.shape_cast %55 : vector<1x8xf32> to vector<1x8x1xf32>
    %57 = vector.broadcast %56 : vector<1x8x1xf32> to vector<1x8x8xf32>
    %58 = arith.subf %54, %57 : vector<1x8x8xf32>
    %59 = math.exp %58 : vector<1x8x8xf32>
    %cst_16 = arith.constant dense<0.000000e+00> : vector<1x8xf32>
    %60 = vector.multi_reduction <add>, %59, %cst_16 [2] : vector<1x8x8xf32> to vector<1x8xf32>
    %61 = vector.shape_cast %60 : vector<1x8xf32> to vector<1x8x1xf32>
    %62 = tpu.reciprocal %61 {approx = true} : vector<1x8x1xf32> -> vector<1x8x1xf32>
    %63 = vector.broadcast %62 : vector<1x8x1xf32> to vector<1x8x8xf32>
    %64 = arith.mulf %59, %63 : vector<1x8x8xf32>
    %65 = arith.truncf %64 : vector<1x8x8xf32> to vector<1x8x8xbf16>
    "tpu.trace_start"() <{level = 10 : i32, message = "bqk,bkd->bqd"}> : () -> ()
    %cst_17 = arith.constant dense<0.000000e+00> : vector<1x8x4xf32>
    %66 = tpu.matmul %65, %53, %cst_17 {dimension_numbers = #tpu.dot_dimension_numbers<[2], [1], [1], [2], [0, 0, 0, 1, 1, 2], [0], [0]>} : vector<1x8x8xbf16>, vector<1x8x4xbf16>, vector<1x8x4xf32> -> vector<1x8x4xf32>
    "tpu.trace_stop"() : () -> ()
    %67 = vector.shape_cast %66 : vector<1x8x4xf32> to vector<8x4xf32>
    %68 = arith.truncf %67 : vector<8x4xf32> to vector<8x4xbf16>
    %c0_18 = arith.constant 0 : index
    %c4 = arith.constant 4 : index
    %69 = vector.load %arg11[%c0_18, %c4] : memref<8x32xbf16, #tpu.memory_space<vmem>>, vector<8x4xbf16>
    tpu.vector_store %arg11[%c0_18, %c4], %68 {strides = array<i32>} : memref<8x32xbf16, #tpu.memory_space<vmem>>, vector<8x4xbf16>,
    %70 = vector.extract_strided_slice %19 {offsets = [0, 8], sizes = [8, 4], strides = [1, 1]} : vector<8x96xf32> to vector<8x4xf32>
    %71 = vector.shape_cast %70 : vector<8x4xf32> to vector<1x8x4xf32>
    %72 = arith.truncf %71 : vector<1x8x4xf32> to vector<1x8x4xbf16>
    %73 = vector.extract_strided_slice %19 {offsets = [0, 40], sizes = [8, 4], strides = [1, 1]} : vector<8x96xf32> to vector<8x4xf32>
    %74 = vector.shape_cast %73 : vector<8x4xf32> to vector<1x8x4xf32>
    %75 = arith.truncf %74 : vector<1x8x4xf32> to vector<1x8x4xbf16>
    %76 = vector.extract_strided_slice %19 {offsets = [0, 72], sizes = [8, 4], strides = [1, 1]} : vector<8x96xf32> to vector<8x4xf32>
    %77 = vector.shape_cast %76 : vector<8x4xf32> to vector<1x8x4xf32>
    %78 = arith.truncf %77 : vector<1x8x4xf32> to vector<1x8x4xbf16>
    "tpu.trace_start"() <{level = 10 : i32, message = "bqd,bkd->bqk"}> : () -> ()
    %cst_19 = arith.constant dense<0.000000e+00> : vector<1x8x8xf32>
    %79 = tpu.matmul %72, %75, %cst_19 {dimension_numbers = #tpu.dot_dimension_numbers<[2], [2], [1], [1], [0, 0, 0, 1, 1, 1], [0], [0]>} : vector<1x8x4xbf16>, vector<1x8x4xbf16>, vector<1x8x8xf32> -> vector<1x8x8xf32>
    "tpu.trace_stop"() : () -> ()
    %cst_20 = arith.constant dense<0xFF800000> : vector<1x8xf32>
    %80 = vector.multi_reduction <maximumf>, %79, %cst_20 [2] : vector<1x8x8xf32> to vector<1x8xf32>
    %81 = vector.shape_cast %80 : vector<1x8xf32> to vector<1x8x1xf32>
    %82 = vector.broadcast %81 : vector<1x8x1xf32> to vector<1x8x8xf32>
    %83 = arith.subf %79, %82 : vector<1x8x8xf32>
    %84 = math.exp %83 : vector<1x8x8xf32>
    %cst_21 = arith.constant dense<0.000000e+00> : vector<1x8xf32>
    %85 = vector.multi_reduction <add>, %84, %cst_21 [2] : vector<1x8x8xf32> to vector<1x8xf32>
    %86 = vector.shape_cast %85 : vector<1x8xf32> to vector<1x8x1xf32>
    %87 = tpu.reciprocal %86 {approx = true} : vector<1x8x1xf32> -> vector<1x8x1xf32>
    %88 = vector.broadcast %87 : vector<1x8x1xf32> to vector<1x8x8xf32>
    %89 = arith.mulf %84, %88 : vector<1x8x8xf32>
    %90 = arith.truncf %89 : vector<1x8x8xf32> to vector<1x8x8xbf16>
    "tpu.trace_start"() <{level = 10 : i32, message = "bqk,bkd->bqd"}> : () -> ()
    %cst_22 = arith.constant dense<0.000000e+00> : vector<1x8x4xf32>
    %91 = tpu.matmul %90, %78, %cst_22 {dimension_numbers = #tpu.dot_dimension_numbers<[2], [1], [1], [2], [0, 0, 0, 1, 1, 2], [0], [0]>} : vector<1x8x8xbf16>, vector<1x8x4xbf16>, vector<1x8x4xf32> -> vector<1x8x4xf32>
    "tpu.trace_stop"() : () -> ()
    %92 = vector.shape_cast %91 : vector<1x8x4xf32> to vector<8x4xf32>
    %93 = arith.truncf %92 : vector<8x4xf32> to vector<8x4xbf16>
    %c0_23 = arith.constant 0 : index
    %c8 = arith.constant 8 : index
    %94 = vector.load %arg11[%c0_23, %c8] : memref<8x32xbf16, #tpu.memory_space<vmem>>, vector<8x4xbf16>
    tpu.vector_store %arg11[%c0_23, %c8], %93 {strides = array<i32>} : memref<8x32xbf16, #tpu.memory_space<vmem>>, vector<8x4xbf16>,
    %95 = vector.extract_strided_slice %19 {offsets = [0, 12], sizes = [8, 4], strides = [1, 1]} : vector<8x96xf32> to vector<8x4xf32>
    %96 = vector.shape_cast %95 : vector<8x4xf32> to vector<1x8x4xf32>
    %97 = arith.truncf %96 : vector<1x8x4xf32> to vector<1x8x4xbf16>
    %98 = vector.extract_strided_slice %19 {offsets = [0, 44], sizes = [8, 4], strides = [1, 1]} : vector<8x96xf32> to vector<8x4xf32>
    %99 = vector.shape_cast %98 : vector<8x4xf32> to vector<1x8x4xf32>
    %100 = arith.truncf %99 : vector<1x8x4xf32> to vector<1x8x4xbf16>
    %101 = vector.extract_strided_slice %19 {offsets = [0, 76], sizes = [8, 4], strides = [1, 1]} : vector<8x96xf32> to vector<8x4xf32>
    %102 = vector.shape_cast %101 : vector<8x4xf32> to vector<1x8x4xf32>
    %103 = arith.truncf %102 : vector<1x8x4xf32> to vector<1x8x4xbf16>
    "tpu.trace_start"() <{level = 10 : i32, message = "bqd,bkd->bqk"}> : () -> ()
    %cst_24 = arith.constant dense<0.000000e+00> : vector<1x8x8xf32>
    %104 = tpu.matmul %97, %100, %cst_24 {dimension_numbers = #tpu.dot_dimension_numbers<[2], [2], [1], [1], [0, 0, 0, 1, 1, 1], [0], [0]>} : vector<1x8x4xbf16>, vector<1x8x4xbf16>, vector<1x8x8xf32> -> vector<1x8x8xf32>
    "tpu.trace_stop"() : () -> ()
    %cst_25 = arith.constant dense<0xFF800000> : vector<1x8xf32>
    %105 = vector.multi_reduction <maximumf>, %104, %cst_25 [2] : vector<1x8x8xf32> to vector<1x8xf32>
    %106 = vector.shape_cast %105 : vector<1x8xf32> to vector<1x8x1xf32>
    %107 = vector.broadcast %106 : vector<1x8x1xf32> to vector<1x8x8xf32>
    %108 = arith.subf %104, %107 : vector<1x8x8xf32>
    %109 = math.exp %108 : vector<1x8x8xf32>
    %cst_26 = arith.constant dense<0.000000e+00> : vector<1x8xf32>
    %110 = vector.multi_reduction <add>, %109, %cst_26 [2] : vector<1x8x8xf32> to vector<1x8xf32>
    %111 = vector.shape_cast %110 : vector<1x8xf32> to vector<1x8x1xf32>
    %112 = tpu.reciprocal %111 {approx = true} : vector<1x8x1xf32> -> vector<1x8x1xf32>
    %113 = vector.broadcast %112 : vector<1x8x1xf32> to vector<1x8x8xf32>
    %114 = arith.mulf %109, %113 : vector<1x8x8xf32>
    %115 = arith.truncf %114 : vector<1x8x8xf32> to vector<1x8x8xbf16>
    "tpu.trace_start"() <{level = 10 : i32, message = "bqk,bkd->bqd"}> : () -> ()
    %cst_27 = arith.constant dense<0.000000e+00> : vector<1x8x4xf32>
    %116 = tpu.matmul %115, %103, %cst_27 {dimension_numbers = #tpu.dot_dimension_numbers<[2], [1], [1], [2], [0, 0, 0, 1, 1, 2], [0], [0]>} : vector<1x8x8xbf16>, vector<1x8x4xbf16>, vector<1x8x4xf32> -> vector<1x8x4xf32>
    "tpu.trace_stop"() : () -> ()
    %117 = vector.shape_cast %116 : vector<1x8x4xf32> to vector<8x4xf32>
    %118 = arith.truncf %117 : vector<8x4xf32> to vector<8x4xbf16>
    %c0_28 = arith.constant 0 : index
    %c12 = arith.constant 12 : index
    %119 = vector.load %arg11[%c0_28, %c12] : memref<8x32xbf16, #tpu.memory_space<vmem>>, vector<8x4xbf16>
    tpu.vector_store %arg11[%c0_28, %c12], %118 {strides = array<i32>} : memref<8x32xbf16, #tpu.memory_space<vmem>>, vector<8x4xbf16>,
    %120 = vector.extract_strided_slice %19 {offsets = [0, 16], sizes = [8, 4], strides = [1, 1]} : vector<8x96xf32> to vector<8x4xf32>
    %121 = vector.shape_cast %120 : vector<8x4xf32> to vector<1x8x4xf32>
    %122 = arith.truncf %121 : vector<1x8x4xf32> to vector<1x8x4xbf16>
    %123 = vector.extract_strided_slice %19 {offsets = [0, 48], sizes = [8, 4], strides = [1, 1]} : vector<8x96xf32> to vector<8x4xf32>
    %124 = vector.shape_cast %123 : vector<8x4xf32> to vector<1x8x4xf32>
    %125 = arith.truncf %124 : vector<1x8x4xf32> to vector<1x8x4xbf16>
    %126 = vector.extract_strided_slice %19 {offsets = [0, 80], sizes = [8, 4], strides = [1, 1]} : vector<8x96xf32> to vector<8x4xf32>
    %127 = vector.shape_cast %126 : vector<8x4xf32> to vector<1x8x4xf32>
    %128 = arith.truncf %127 : vector<1x8x4xf32> to vector<1x8x4xbf16>
    "tpu.trace_start"() <{level = 10 : i32, message = "bqd,bkd->bqk"}> : () -> ()
    %cst_29 = arith.constant dense<0.000000e+00> : vector<1x8x8xf32>
    %129 = tpu.matmul %122, %125, %cst_29 {dimension_numbers = #tpu.dot_dimension_numbers<[2], [2], [1], [1], [0, 0, 0, 1, 1, 1], [0], [0]>} : vector<1x8x4xbf16>, vector<1x8x4xbf16>, vector<1x8x8xf32> -> vector<1x8x8xf32>
    "tpu.trace_stop"() : () -> ()
    %cst_30 = arith.constant dense<0xFF800000> : vector<1x8xf32>
    %130 = vector.multi_reduction <maximumf>, %129, %cst_30 [2] : vector<1x8x8xf32> to vector<1x8xf32>
    %131 = vector.shape_cast %130 : vector<1x8xf32> to vector<1x8x1xf32>
    %132 = vector.broadcast %131 : vector<1x8x1xf32> to vector<1x8x8xf32>
    %133 = arith.subf %129, %132 : vector<1x8x8xf32>
    %134 = math.exp %133 : vector<1x8x8xf32>
    %cst_31 = arith.constant dense<0.000000e+00> : vector<1x8xf32>
    %135 = vector.multi_reduction <add>, %134, %cst_31 [2] : vector<1x8x8xf32> to vector<1x8xf32>
    %136 = vector.shape_cast %135 : vector<1x8xf32> to vector<1x8x1xf32>
    %137 = tpu.reciprocal %136 {approx = true} : vector<1x8x1xf32> -> vector<1x8x1xf32>
    %138 = vector.broadcast %137 : vector<1x8x1xf32> to vector<1x8x8xf32>
    %139 = arith.mulf %134, %138 : vector<1x8x8xf32>
    %140 = arith.truncf %139 : vector<1x8x8xf32> to vector<1x8x8xbf16>
    "tpu.trace_start"() <{level = 10 : i32, message = "bqk,bkd->bqd"}> : () -> ()
    %cst_32 = arith.constant dense<0.000000e+00> : vector<1x8x4xf32>
    %141 = tpu.matmul %140, %128, %cst_32 {dimension_numbers = #tpu.dot_dimension_numbers<[2], [1], [1], [2], [0, 0, 0, 1, 1, 2], [0], [0]>} : vector<1x8x8xbf16>, vector<1x8x4xbf16>, vector<1x8x4xf32> -> vector<1x8x4xf32>
    "tpu.trace_stop"() : () -> ()
    %142 = vector.shape_cast %141 : vector<1x8x4xf32> to vector<8x4xf32>
    %143 = arith.truncf %142 : vector<8x4xf32> to vector<8x4xbf16>
    %c0_33 = arith.constant 0 : index
    %c16 = arith.constant 16 : index
    %144 = vector.load %arg11[%c0_33, %c16] : memref<8x32xbf16, #tpu.memory_space<vmem>>, vector<8x4xbf16>
    tpu.vector_store %arg11[%c0_33, %c16], %143 {strides = array<i32>} : memref<8x32xbf16, #tpu.memory_space<vmem>>, vector<8x4xbf16>,
    %145 = vector.extract_strided_slice %19 {offsets = [0, 20], sizes = [8, 4], strides = [1, 1]} : vector<8x96xf32> to vector<8x4xf32>
    %146 = vector.shape_cast %145 : vector<8x4xf32> to vector<1x8x4xf32>
    %147 = arith.truncf %146 : vector<1x8x4xf32> to vector<1x8x4xbf16>
    %148 = vector.extract_strided_slice %19 {offsets = [0, 52], sizes = [8, 4], strides = [1, 1]} : vector<8x96xf32> to vector<8x4xf32>
    %149 = vector.shape_cast %148 : vector<8x4xf32> to vector<1x8x4xf32>
    %150 = arith.truncf %149 : vector<1x8x4xf32> to vector<1x8x4xbf16>
    %151 = vector.extract_strided_slice %19 {offsets = [0, 84], sizes = [8, 4], strides = [1, 1]} : vector<8x96xf32> to vector<8x4xf32>
    %152 = vector.shape_cast %151 : vector<8x4xf32> to vector<1x8x4xf32>
    %153 = arith.truncf %152 : vector<1x8x4xf32> to vector<1x8x4xbf16>
    "tpu.trace_start"() <{level = 10 : i32, message = "bqd,bkd->bqk"}> : () -> ()
    %cst_34 = arith.constant dense<0.000000e+00> : vector<1x8x8xf32>
    %154 = tpu.matmul %147, %150, %cst_34 {dimension_numbers = #tpu.dot_dimension_numbers<[2], [2], [1], [1], [0, 0, 0, 1, 1, 1], [0], [0]>} : vector<1x8x4xbf16>, vector<1x8x4xbf16>, vector<1x8x8xf32> -> vector<1x8x8xf32>
    "tpu.trace_stop"() : () -> ()
    %cst_35 = arith.constant dense<0xFF800000> : vector<1x8xf32>
    %155 = vector.multi_reduction <maximumf>, %154, %cst_35 [2] : vector<1x8x8xf32> to vector<1x8xf32>
    %156 = vector.shape_cast %155 : vector<1x8xf32> to vector<1x8x1xf32>
    %157 = vector.broadcast %156 : vector<1x8x1xf32> to vector<1x8x8xf32>
    %158 = arith.subf %154, %157 : vector<1x8x8xf32>
    %159 = math.exp %158 : vector<1x8x8xf32>
    %cst_36 = arith.constant dense<0.000000e+00> : vector<1x8xf32>
    %160 = vector.multi_reduction <add>, %159, %cst_36 [2] : vector<1x8x8xf32> to vector<1x8xf32>
    %161 = vector.shape_cast %160 : vector<1x8xf32> to vector<1x8x1xf32>
    %162 = tpu.reciprocal %161 {approx = true} : vector<1x8x1xf32> -> vector<1x8x1xf32>
    %163 = vector.broadcast %162 : vector<1x8x1xf32> to vector<1x8x8xf32>
    %164 = arith.mulf %159, %163 : vector<1x8x8xf32>
    %165 = arith.truncf %164 : vector<1x8x8xf32> to vector<1x8x8xbf16>
    "tpu.trace_start"() <{level = 10 : i32, message = "bqk,bkd->bqd"}> : () -> ()
    %cst_37 = arith.constant dense<0.000000e+00> : vector<1x8x4xf32>
    %166 = tpu.matmul %165, %153, %cst_37 {dimension_numbers = #tpu.dot_dimension_numbers<[2], [1], [1], [2], [0, 0, 0, 1, 1, 2], [0], [0]>} : vector<1x8x8xbf16>, vector<1x8x4xbf16>, vector<1x8x4xf32> -> vector<1x8x4xf32>
    "tpu.trace_stop"() : () -> ()
    %167 = vector.shape_cast %166 : vector<1x8x4xf32> to vector<8x4xf32>
    %168 = arith.truncf %167 : vector<8x4xf32> to vector<8x4xbf16>
    %c0_38 = arith.constant 0 : index
    %c20 = arith.constant 20 : index
    %169 = vector.load %arg11[%c0_38, %c20] : memref<8x32xbf16, #tpu.memory_space<vmem>>, vector<8x4xbf16>
    tpu.vector_store %arg11[%c0_38, %c20], %168 {strides = array<i32>} : memref<8x32xbf16, #tpu.memory_space<vmem>>, vector<8x4xbf16>,
    %170 = vector.extract_strided_slice %19 {offsets = [0, 24], sizes = [8, 4], strides = [1, 1]} : vector<8x96xf32> to vector<8x4xf32>
    %171 = vector.shape_cast %170 : vector<8x4xf32> to vector<1x8x4xf32>
    %172 = arith.truncf %171 : vector<1x8x4xf32> to vector<1x8x4xbf16>
    %173 = vector.extract_strided_slice %19 {offsets = [0, 56], sizes = [8, 4], strides = [1, 1]} : vector<8x96xf32> to vector<8x4xf32>
    %174 = vector.shape_cast %173 : vector<8x4xf32> to vector<1x8x4xf32>
    %175 = arith.truncf %174 : vector<1x8x4xf32> to vector<1x8x4xbf16>
    %176 = vector.extract_strided_slice %19 {offsets = [0, 88], sizes = [8, 4], strides = [1, 1]} : vector<8x96xf32> to vector<8x4xf32>
    %177 = vector.shape_cast %176 : vector<8x4xf32> to vector<1x8x4xf32>
    %178 = arith.truncf %177 : vector<1x8x4xf32> to vector<1x8x4xbf16>
    "tpu.trace_start"() <{level = 10 : i32, message = "bqd,bkd->bqk"}> : () -> ()
    %cst_39 = arith.constant dense<0.000000e+00> : vector<1x8x8xf32>
    %179 = tpu.matmul %172, %175, %cst_39 {dimension_numbers = #tpu.dot_dimension_numbers<[2], [2], [1], [1], [0, 0, 0, 1, 1, 1], [0], [0]>} : vector<1x8x4xbf16>, vector<1x8x4xbf16>, vector<1x8x8xf32> -> vector<1x8x8xf32>
    "tpu.trace_stop"() : () -> ()
    %cst_40 = arith.constant dense<0xFF800000> : vector<1x8xf32>
    %180 = vector.multi_reduction <maximumf>, %179, %cst_40 [2] : vector<1x8x8xf32> to vector<1x8xf32>
    %181 = vector.shape_cast %180 : vector<1x8xf32> to vector<1x8x1xf32>
    %182 = vector.broadcast %181 : vector<1x8x1xf32> to vector<1x8x8xf32>
    %183 = arith.subf %179, %182 : vector<1x8x8xf32>
    %184 = math.exp %183 : vector<1x8x8xf32>
    %cst_41 = arith.constant dense<0.000000e+00> : vector<1x8xf32>
    %185 = vector.multi_reduction <add>, %184, %cst_41 [2] : vector<1x8x8xf32> to vector<1x8xf32>
    %186 = vector.shape_cast %185 : vector<1x8xf32> to vector<1x8x1xf32>
    %187 = tpu.reciprocal %186 {approx = true} : vector<1x8x1xf32> -> vector<1x8x1xf32>
    %188 = vector.broadcast %187 : vector<1x8x1xf32> to vector<1x8x8xf32>
    %189 = arith.mulf %184, %188 : vector<1x8x8xf32>
    %190 = arith.truncf %189 : vector<1x8x8xf32> to vector<1x8x8xbf16>
    "tpu.trace_start"() <{level = 10 : i32, message = "bqk,bkd->bqd"}> : () -> ()
    %cst_42 = arith.constant dense<0.000000e+00> : vector<1x8x4xf32>
    %191 = tpu.matmul %190, %178, %cst_42 {dimension_numbers = #tpu.dot_dimension_numbers<[2], [1], [1], [2], [0, 0, 0, 1, 1, 2], [0], [0]>} : vector<1x8x8xbf16>, vector<1x8x4xbf16>, vector<1x8x4xf32> -> vector<1x8x4xf32>
    "tpu.trace_stop"() : () -> ()
    %192 = vector.shape_cast %191 : vector<1x8x4xf32> to vector<8x4xf32>
    %193 = arith.truncf %192 : vector<8x4xf32> to vector<8x4xbf16>
    %c0_43 = arith.constant 0 : index
    %c24 = arith.constant 24 : index
    %194 = vector.load %arg11[%c0_43, %c24] : memref<8x32xbf16, #tpu.memory_space<vmem>>, vector<8x4xbf16>
    tpu.vector_store %arg11[%c0_43, %c24], %193 {strides = array<i32>} : memref<8x32xbf16, #tpu.memory_space<vmem>>, vector<8x4xbf16>,
    %195 = vector.extract_strided_slice %19 {offsets = [0, 28], sizes = [8, 4], strides = [1, 1]} : vector<8x96xf32> to vector<8x4xf32>
    %196 = vector.shape_cast %195 : vector<8x4xf32> to vector<1x8x4xf32>
    %197 = arith.truncf %196 : vector<1x8x4xf32> to vector<1x8x4xbf16>
    %198 = vector.extract_strided_slice %19 {offsets = [0, 60], sizes = [8, 4], strides = [1, 1]} : vector<8x96xf32> to vector<8x4xf32>
    %199 = vector.shape_cast %198 : vector<8x4xf32> to vector<1x8x4xf32>
    %200 = arith.truncf %199 : vector<1x8x4xf32> to vector<1x8x4xbf16>
    %201 = vector.extract_strided_slice %19 {offsets = [0, 92], sizes = [8, 4], strides = [1, 1]} : vector<8x96xf32> to vector<8x4xf32>
    %202 = vector.shape_cast %201 : vector<8x4xf32> to vector<1x8x4xf32>
    %203 = arith.truncf %202 : vector<1x8x4xf32> to vector<1x8x4xbf16>
    "tpu.trace_start"() <{level = 10 : i32, message = "bqd,bkd->bqk"}> : () -> ()
    %cst_44 = arith.constant dense<0.000000e+00> : vector<1x8x8xf32>
    %204 = tpu.matmul %197, %200, %cst_44 {dimension_numbers = #tpu.dot_dimension_numbers<[2], [2], [1], [1], [0, 0, 0, 1, 1, 1], [0], [0]>} : vector<1x8x4xbf16>, vector<1x8x4xbf16>, vector<1x8x8xf32> -> vector<1x8x8xf32>
    "tpu.trace_stop"() : () -> ()
    %cst_45 = arith.constant dense<0xFF800000> : vector<1x8xf32>
    %205 = vector.multi_reduction <maximumf>, %204, %cst_45 [2] : vector<1x8x8xf32> to vector<1x8xf32>
    %206 = vector.shape_cast %205 : vector<1x8xf32> to vector<1x8x1xf32>
    %207 = vector.broadcast %206 : vector<1x8x1xf32> to vector<1x8x8xf32>
    %208 = arith.subf %204, %207 : vector<1x8x8xf32>
    %209 = math.exp %208 : vector<1x8x8xf32>
    %cst_46 = arith.constant dense<0.000000e+00> : vector<1x8xf32>
    %210 = vector.multi_reduction <add>, %209, %cst_46 [2] : vector<1x8x8xf32> to vector<1x8xf32>
    %211 = vector.shape_cast %210 : vector<1x8xf32> to vector<1x8x1xf32>
    %212 = tpu.reciprocal %211 {approx = true} : vector<1x8x1xf32> -> vector<1x8x1xf32>
    %213 = vector.broadcast %212 : vector<1x8x1xf32> to vector<1x8x8xf32>
    %214 = arith.mulf %209, %213 : vector<1x8x8xf32>
    %215 = arith.truncf %214 : vector<1x8x8xf32> to vector<1x8x8xbf16>
    "tpu.trace_start"() <{level = 10 : i32, message = "bqk,bkd->bqd"}> : () -> ()
    %cst_47 = arith.constant dense<0.000000e+00> : vector<1x8x4xf32>
    %216 = tpu.matmul %215, %203, %cst_47 {dimension_numbers = #tpu.dot_dimension_numbers<[2], [1], [1], [2], [0, 0, 0, 1, 1, 2], [0], [0]>} : vector<1x8x8xbf16>, vector<1x8x4xbf16>, vector<1x8x4xf32> -> vector<1x8x4xf32>
    "tpu.trace_stop"() : () -> ()
    %217 = vector.shape_cast %216 : vector<1x8x4xf32> to vector<8x4xf32>
    %218 = arith.truncf %217 : vector<8x4xf32> to vector<8x4xbf16>
    %c0_48 = arith.constant 0 : index
    %c28 = arith.constant 28 : index
    %219 = vector.load %arg11[%c0_48, %c28] : memref<8x32xbf16, #tpu.memory_space<vmem>>, vector<8x4xbf16>
    tpu.vector_store %arg11[%c0_48, %c28], %218 {strides = array<i32>} : memref<8x32xbf16, #tpu.memory_space<vmem>>, vector<8x4xbf16>,
    %c0_49 = arith.constant 0 : index
    %c0_50 = arith.constant 0 : index
    %220 = vector.load %arg11[%c0_49, %c0_50] : memref<8x32xbf16, #tpu.memory_space<vmem>>, vector<8x32xbf16>
    %c0_51 = arith.constant 0 : index
    %c0_52 = arith.constant 0 : index
    %c0_53 = arith.constant 0 : index
    %221 = vector.load %arg4[%c0_51, %c0_52, %c0_53] : memref<1x32x32xbf16, #tpu.memory_space<vmem>>, vector<1x32x32xbf16>
    %222 = vector.shape_cast %221 : vector<1x32x32xbf16> to vector<32x32xbf16>
    %cst_54 = arith.constant dense<0.000000e+00> : vector<8x32xf32>
    %223 = tpu.matmul %220, %222, %cst_54 {dimension_numbers = #tpu.dot_dimension_numbers<[1], [0], [0], [1], [0, 0, 1, 1], [], []>} : vector<8x32xbf16>, vector<32x32xbf16>, vector<8x32xf32> -> vector<8x32xf32>
    %224 = vector.broadcast %3 : vector<1x32xf32> to vector<8x32xf32>
    %225 = arith.addf %223, %224 : vector<8x32xf32>
    %226 = arith.addf %13, %225 : vector<8x32xf32>
    %cst_55 = arith.constant dense<0.000000e+00> : vector<8xf32>
    %227 = vector.multi_reduction <add>, %226, %cst_55 [1] : vector<8x32xf32> to vector<8xf32>
    %228 = vector.shape_cast %227 : vector<8xf32> to vector<8x1xf32>
    %cst_56 = arith.constant 3.200000e+01 : f32
    %229 = vector.broadcast %cst_56 : f32 to vector<8x1xf32>
    %230 = arith.divf %228, %229 : vector<8x1xf32>
    %231 = vector.broadcast %230 : vector<8x1xf32> to vector<8x32xf32>
    %232 = arith.subf %226, %231 : vector<8x32xf32>
    %233 = arith.mulf %232, %232 : vector<8x32xf32>
    %cst_57 = arith.constant dense<0.000000e+00> : vector<8xf32>
    %234 = vector.multi_reduction <add>, %233, %cst_57 [1] : vector<8x32xf32> to vector<8xf32>
    %235 = vector.shape_cast %234 : vector<8xf32> to vector<8x1xf32>
    %cst_58 = arith.constant 3.200000e+01 : f32
    %236 = vector.broadcast %cst_58 : f32 to vector<8x1xf32>
    %237 = arith.divf %235, %236 : vector<8x1xf32>
    %238 = vector.broadcast %230 : vector<8x1xf32> to vector<8x32xf32>
    %239 = arith.subf %226, %238 : vector<8x32xf32>
    %cst_59 = arith.constant 9.99999974E-6 : f32
    %240 = vector.broadcast %cst_59 : f32 to vector<8x1xf32>
    %241 = arith.addf %237, %240 : vector<8x1xf32>
    %242 = math.rsqrt %241 : vector<8x1xf32>
    %243 = vector.broadcast %242 : vector<8x1xf32> to vector<8x32xf32>
    %244 = arith.mulf %239, %243 : vector<8x32xf32>
    %245 = vector.broadcast %4 : vector<1x32xf32> to vector<8x32xf32>
    %246 = arith.mulf %244, %245 : vector<8x32xf32>
    %247 = vector.broadcast %5 : vector<1x32xf32> to vector<8x32xf32>
    %248 = arith.addf %246, %247 : vector<8x32xf32>
    %249 = arith.truncf %248 : vector<8x32xf32> to vector<8x32xbf16>
    %c0_60 = arith.constant 0 : index
    %c0_61 = arith.constant 0 : index
    %c0_62 = arith.constant 0 : index
    %250 = vector.load %arg5[%c0_60, %c0_61, %c0_62] : memref<1x32x64xbf16, #tpu.memory_space<vmem>>, vector<1x32x64xbf16>
    %251 = vector.shape_cast %250 : vector<1x32x64xbf16> to vector<32x64xbf16>
    %cst_63 = arith.constant dense<0.000000e+00> : vector<8x64xf32>
    %252 = tpu.matmul %249, %251, %cst_63 {dimension_numbers = #tpu.dot_dimension_numbers<[1], [0], [0], [1], [0, 0, 1, 1], [], []>} : vector<8x32xbf16>, vector<32x64xbf16>, vector<8x64xf32> -> vector<8x64xf32>
    %253 = vector.broadcast %6 : vector<1x64xf32> to vector<8x64xf32>
    %254 = arith.addf %252, %253 : vector<8x64xf32>
    %cst_64 = arith.constant 0.000000e+00 : f32
    %255 = vector.broadcast %cst_64 : f32 to vector<8x64xf32>
    %256 = arith.maximumf %254, %255 : vector<8x64xf32>
    %257 = arith.truncf %256 : vector<8x64xf32> to vector<8x64xbf16>
    %c0_65 = arith.constant 0 : index
    %c0_66 = arith.constant 0 : index
    %c0_67 = arith.constant 0 : index
    %258 = vector.load %arg6[%c0_65, %c0_66, %c0_67] : memref<1x64x32xbf16, #tpu.memory_space<vmem>>, vector<1x64x32xbf16>
    %259 = vector.shape_cast %258 : vector<1x64x32xbf16> to vector<64x32xbf16>
    %cst_68 = arith.constant dense<0.000000e+00> : vector<8x32xf32>
    %260 = tpu.matmul %257, %259, %cst_68 {dimension_numbers = #tpu.dot_dimension_numbers<[1], [0], [0], [1], [0, 0, 1, 1], [], []>} : vector<8x64xbf16>, vector<64x32xbf16>, vector<8x32xf32> -> vector<8x32xf32>
    %261 = vector.broadcast %7 : vector<1x32xf32> to vector<8x32xf32>
    %262 = arith.addf %260, %261 : vector<8x32xf32>
    %263 = arith.addf %248, %262 : vector<8x32xf32>
    %cst_69 = arith.constant dense<0.000000e+00> : vector<8xf32>
    %264 = vector.multi_reduction <add>, %263, %cst_69 [1] : vector<8x32xf32> to vector<8xf32>
    %265 = vector.shape_cast %264 : vector<8xf32> to vector<8x1xf32>
    %cst_70 = arith.constant 3.200000e+01 : f32
    %266 = vector.broadcast %cst_70 : f32 to vector<8x1xf32>
    %267 = arith.divf %265, %266 : vector<8x1xf32>
    %268 = vector.broadcast %267 : vector<8x1xf32> to vector<8x32xf32>
    %269 = arith.subf %263, %268 : vector<8x32xf32>
    %270 = arith.mulf %269, %269 : vector<8x32xf32>
    %cst_71 = arith.constant dense<0.000000e+00> : vector<8xf32>
    %271 = vector.multi_reduction <add>, %270, %cst_71 [1] : vector<8x32xf32> to vector<8xf32>
    %272 = vector.shape_cast %271 : vector<8xf32> to vector<8x1xf32>
    %cst_72 = arith.constant 3.200000e+01 : f32
    %273 = vector.broadcast %cst_72 : f32 to vector<8x1xf32>
    %274 = arith.divf %272, %273 : vector<8x1xf32>
    %275 = vector.broadcast %267 : vector<8x1xf32> to vector<8x32xf32>
    %276 = arith.subf %263, %275 : vector<8x32xf32>
    %cst_73 = arith.constant 9.99999974E-6 : f32
    %277 = vector.broadcast %cst_73 : f32 to vector<8x1xf32>
    %278 = arith.addf %274, %277 : vector<8x1xf32>
    %279 = math.rsqrt %278 : vector<8x1xf32>
    %280 = vector.broadcast %279 : vector<8x1xf32> to vector<8x32xf32>
    %281 = arith.mulf %276, %280 : vector<8x32xf32>
    %282 = vector.broadcast %8 : vector<1x32xf32> to vector<8x32xf32>
    %283 = arith.mulf %281, %282 : vector<8x32xf32>
    %284 = vector.broadcast %9 : vector<1x32xf32> to vector<8x32xf32>
    %285 = arith.addf %283, %284 : vector<8x32xf32>
    %c0_74 = arith.constant 0 : index
    %c0_75 = arith.constant 0 : index
    %286 = vector.load %arg10[%c0_74, %c0_75] : memref<8x32xf32, #tpu.memory_space<vmem>>, vector<8x32xf32>
    tpu.vector_store %arg10[%c0_74, %c0_75], %285 {strides = array<i32>} : memref<8x32xf32, #tpu.memory_space<vmem>>, vector<8x32xf32>,
    %c1_i32 = arith.constant 1 : i32
    %287 = arith.cmpi eq, %arg1, %c1_i32 : i32
    %288 = arith.extui %287 : i1 to i32
    %c0_i32_76 = arith.constant 0 : i32
    %289 = arith.cmpi ne, %288, %c0_i32_76 : i32
    scf.if %289 {
      %c0_77 = arith.constant 0 : index
      %c0_78 = arith.constant 0 : index
      %290 = vector.load %arg8[%c0_77, %c0_78] : memref<2x32xf32, #tpu.memory_space<vmem>>, vector<1x32xf32>
      %c1 = arith.constant 1 : index
      %c0_79 = arith.constant 0 : index
      %291 = vector.load %arg8[%c1, %c0_79] : memref<2x32xf32, #tpu.memory_space<vmem>>, vector<1x32xf32>
      %cst_80 = arith.constant dense<0.000000e+00> : vector<8xf32>
      %292 = vector.multi_reduction <add>, %285, %cst_80 [1] : vector<8x32xf32> to vector<8xf32>
      %293 = vector.shape_cast %292 : vector<8xf32> to vector<8x1xf32>
      %cst_81 = arith.constant 3.200000e+01 : f32
      %294 = vector.broadcast %cst_81 : f32 to vector<8x1xf32>
      %295 = arith.divf %293, %294 : vector<8x1xf32>
      %296 = vector.broadcast %295 : vector<8x1xf32> to vector<8x32xf32>
      %297 = arith.subf %285, %296 : vector<8x32xf32>
      %298 = arith.mulf %297, %297 : vector<8x32xf32>
      %cst_82 = arith.constant dense<0.000000e+00> : vector<8xf32>
      %299 = vector.multi_reduction <add>, %298, %cst_82 [1] : vector<8x32xf32> to vector<8xf32>
      %300 = vector.shape_cast %299 : vector<8xf32> to vector<8x1xf32>
      %cst_83 = arith.constant 3.200000e+01 : f32
      %301 = vector.broadcast %cst_83 : f32 to vector<8x1xf32>
      %302 = arith.divf %300, %301 : vector<8x1xf32>
      %303 = vector.broadcast %295 : vector<8x1xf32> to vector<8x32xf32>
      %304 = arith.subf %285, %303 : vector<8x32xf32>
      %cst_84 = arith.constant 9.99999974E-6 : f32
      %305 = vector.broadcast %cst_84 : f32 to vector<8x1xf32>
      %306 = arith.addf %302, %305 : vector<8x1xf32>
      %307 = math.rsqrt %306 : vector<8x1xf32>
      %308 = vector.broadcast %307 : vector<8x1xf32> to vector<8x32xf32>
      %309 = arith.mulf %304, %308 : vector<8x32xf32>
      %310 = vector.broadcast %290 : vector<1x32xf32> to vector<8x32xf32>
      %311 = arith.mulf %309, %310 : vector<8x32xf32>
      %312 = vector.broadcast %291 : vector<1x32xf32> to vector<8x32xf32>
      %313 = arith.addf %311, %312 : vector<8x32xf32>
      %314 = vector.shape_cast %313 : vector<8x32xf32> to vector<1x8x32xf32>
      %c0_85 = arith.constant 0 : index
      %c0_86 = arith.constant 0 : index
      %c0_87 = arith.constant 0 : index
      %315 = vector.load %arg9[%c0_85, %c0_86, %c0_87] : memref<1x8x32xf32, #tpu.memory_space<vmem>>, vector<1x8x32xf32>
      tpu.vector_store %arg9[%c0_85, %c0_86, %c0_87], %314 {strides = array<i32>} : memref<1x8x32xf32, #tpu.memory_space<vmem>>, vector<1x8x32xf32>,
    } else {
    }
    return
  }
  func.func @transform_0(%arg0: i32, %arg1: i32) -> (i32, i32, i32) {
    %c0_i32 = arith.constant 0 : i32
    %c0_i32_0 = arith.constant 0 : i32
    %c0_i32_1 = arith.constant 0 : i32
    return %arg0, %c0_i32, %c0_i32_0 : i32, i32, i32
  }
  func.func @transform_1(%arg0: i32, %arg1: i32) -> (i32, i32, i32) {
    %c0_i32 = arith.constant 0 : i32
    %c0_i32_0 = arith.constant 0 : i32
    %c0_i32_1 = arith.constant 0 : i32
    return %arg1, %c0_i32, %c0_i32_0 : i32, i32, i32
  }
  func.func @transform_2(%arg0: i32, %arg1: i32) -> (i32, i32, i32) {
    %c0_i32 = arith.constant 0 : i32
    %c0_i32_0 = arith.constant 0 : i32
    %c0_i32_1 = arith.constant 0 : i32
    return %arg1, %c0_i32, %c0_i32_0 : i32, i32, i32
  }
  func.func @transform_3(%arg0: i32, %arg1: i32) -> (i32, i32, i32) {
    %c0_i32 = arith.constant 0 : i32
    %c0_i32_0 = arith.constant 0 : i32
    %c0_i32_1 = arith.constant 0 : i32
    return %arg1, %c0_i32, %c0_i32_0 : i32, i32, i32
  }
  func.func @transform_4(%arg0: i32, %arg1: i32) -> (i32, i32, i32) {
    %c0_i32 = arith.constant 0 : i32
    %c0_i32_0 = arith.constant 0 : i32
    %c0_i32_1 = arith.constant 0 : i32
    return %arg1, %c0_i32, %c0_i32_0 : i32, i32, i32
  }
  func.func @transform_5(%arg0: i32, %arg1: i32) -> (i32, i32, i32) {
    %c0_i32 = arith.constant 0 : i32
    %c0_i32_0 = arith.constant 0 : i32
    %c0_i32_1 = arith.constant 0 : i32
    return %arg1, %c0_i32, %c0_i32_0 : i32, i32, i32
  }
  func.func @transform_6(%arg0: i32, %arg1: i32) -> (i32, i32) {
    %c0_i32 = arith.constant 0 : i32
    %c0_i32_0 = arith.constant 0 : i32
    %c0_i32_1 = arith.constant 0 : i32
    return %c0_i32, %c0_i32_0 : i32, i32
  }
  func.func @transform_7(%arg0: i32, %arg1: i32) -> (i32, i32, i32) {
    %c0_i32 = arith.constant 0 : i32
    %c0_i32_0 = arith.constant 0 : i32
    %c0_i32_1 = arith.constant 0 : i32
    return %arg0, %c0_i32, %c0_i32_0 : i32, i32, i32
  }
}

</mosaic_0001>

<llo_original>
// kernel: tpu_custom_call.1
$region0: #{tpu_custom_call.1}
  #allocation0 [shape = 'u32[]', space=smem, size = 0x4, offset = 0x4, fixed_abs, tag = 'smem constant byte address 0x4 - core index']
  #allocation1 [shape = 'u32[72,128]{1,0:T(1,128)}', space=vmem, size = 0x9000, scoped, tag = 'internal scratch']
  #allocation2 [shape = 'f32[8,32]{1,0:T(8,128)}', space=vmem, size = 0x1000, scoped, tag = 'scratch operand']
  #allocation3 [shape = 'bf16[8,32]{1,0:T(8,128)(2,1)}', space=vmem, size = 0x800, scoped, tag = 'scratch operand']
  %s0 = inlined_call_operand.hbm [shape: f32[2,8,32], index: 0, kind: input, shape index: {}]
  %s1 = inlined_call_operand.vmem [shape: bf16[2,32,96], index: 1, kind: input, shape index: {}]
  %s2 = inlined_call_operand.vmem [shape: bf16[2,32,32], index: 2, kind: input, shape index: {}]
  %s3 = inlined_call_operand.vmem [shape: bf16[2,32,64], index: 3, kind: input, shape index: {}]
  %s4 = inlined_call_operand.vmem [shape: bf16[2,64,32], index: 4, kind: input, shape index: {}]
  %s5 = inlined_call_operand.hbm [shape: f32[2,8,96], index: 5, kind: input, shape index: {}]
  %s6 = inlined_call_operand.vmem [shape: f32[2,32], index: 6, kind: input, shape index: {}]
  %s7 = inlined_call_operand.hbm [shape: f32[2,8,32], index: 7, kind: output, shape index: {}]
  %s8 = sld [smem:[#allocation0]]
  $region77: #{tpu_custom_call.1} parent=0
    _
  %s10 = ssub.s32 1, %s8
  %s11 = scalar_select 0, %s10, %s8
  $region1: #{tpu_custom_call.1} parent=0
    #allocation4 [shape = 'u8[8192]{0}', space=vmem, size = 0x2000, scoped, tag = 'input window, operand 0']
    #allocation5 [shape = 's32[2]{0}', space=sflag, size = 0x8, scoped, tag = 'scoped memory for tpu_custom_call.1']
    #allocation6 [shape = 's32[2]{0}', space=sflag, size = 0x8, scoped, tag = 'scoped memory for tpu_custom_call.1']
    #allocation7 [shape = 'u8[8192]{0}', space=vmem, size = 0x2000, scoped, tag = 'input window, operand 5']
    #allocation8 [shape = 's32[2]{0}', space=sflag, size = 0x8, scoped, tag = 'scoped memory for tpu_custom_call.1']
    #allocation9 [shape = 'u8[8192]{0}', space=vmem, size = 0x2000, scoped, tag = 'output window, operand 0']
    %12 = vsyncpa [#allocation5], 0
    %s13 = scalar_lea.sflag [#allocation5], 1
    %14 = vsyncpa %s13, 0
    %15 = vsyncpa [#allocation8], 0
    %s16 = scalar_lea.sflag [#allocation8], 1
    %17 = vsyncpa %s16, 0
    %18 = vsyncpa [#allocation6], 0
    %s19 = scalar_lea.sflag [#allocation6], 1
    %20 = vsyncpa %s19, 0
    loop: start=0, step=1, limit=6
    $region2: #{tpu_custom_call.1} parent=1 // loop_pre_header
      _
    $region3: #{tpu_custom_call.1} parent=1 // loop_header
      %s22 = sphi 0, %s26
      %p23 = scmp.ge.s32.totalorder %s22, 6
      %s29 = sphi 0, %s41
      %s30 = sphi 0, %s37
      %s31 = sphi 0, %s29
      %s32 = sphi 0, %s30
      %s33 = sphi 0, %s31
      %s34 = sphi 0, %s32
      %s44 = sphi 0, %s46
      %s47 = sphi 0, %s44
      %s48 = sphi 0, %s47
      %s64 = sphi 0, %s48
      %s70 = sphi 0, %s72
      %s73 = sphi 0, %s70
      %s74 = sphi 0, %s73
      %s90 = sphi 0, %s74
      %s96 = sphi 0, %s98
      %s99 = sphi 0, %s96
      %s100 = sphi 0, %s99
      %s116 = sphi 0, %s100
      %s122 = sphi 0, %s124
      %s125 = sphi 0, %s122
      %s126 = sphi 0, %s125
      %s142 = sphi 0, %s126
      %s148 = sphi 0, %s150
      %s151 = sphi 0, %s148
      %s152 = sphi 0, %s151
      %s168 = sphi 0, %s152
      %s174 = sphi 0, %s176
      %s177 = sphi 0, %s174
      %s178 = sphi 0, %s177
      %s194 = sphi 0, %s178
      %s198 = sphi 0, %s198
      %s200 = sphi 0, %s198
      %s201 = sphi 0, %s200
      %s215 = sphi 0, %s201
      %s221 = sphi 0, %s223
      %s224 = sphi 0, %s221
      %s225 = sphi 0, %s224
      %s241 = sphi 0, %s225
    $region4: #{tpu_custom_call.1} parent=1 // loop_header_branch
      %25 = sbr.rel (%p23) target = $region8
    $region5: #{tpu_custom_call.1} parent=1 // loop_body
      %s27 = ssub.s32 %s22, 1
      %s28 = ssub.s32 %s22, 2
      %s35 = sadd.s32 1, %s30
      %p36 = scmp.ge.s32.totalorder %s35, 2
      %s37 = scalar_select %p36, 0, %s35
      %s38 = sadd.s32 1, %s29
      %s39 = scalar_select %p36, %s38, %s29
      %p40 = scmp.ge.s32.totalorder %s39, 2
      %s41 = scalar_select %p40, 0, %s39
      %s42 = ssub.s32 %s29, %s41
      %p43 = scmp.eq.s32.totalorder %s42, 0
      %s45 = sadd.s32 %s44, 1
      %s46 = scalar_select %p43, %s44, %s45
      %p49 = pneg %p43
      %p50 = scmp.eq.s32.totalorder %s22, 3
      %p51 = por %p49, %p50
      %p52 = scmp.ne.s32.totalorder %s44, %s47
      %p53 = scmp.eq.s32.totalorder %s22, 0
      %p54 = por %p52, %p53
      %p55 = scmp.ne.s32.totalorder %s44, %s47
      %p56 = scmp.eq.s32.totalorder %s27, 3
      %p57 = por %p55, %p56
      %p58 = scmp.ne.s32.totalorder %s47, %s48
      %p59 = scmp.eq.s32.totalorder %s27, 0
      %p60 = por %p58, %p59
      %p61 = scmp.ne.s32.totalorder %s47, %s48
      %p62 = scmp.eq.s32.totalorder %s28, 3
      %p63 = por %p61, %p62
      %p65 = scmp.ne.s32.totalorder %s48, %s64
      %p66 = scmp.eq.s32.totalorder %s28, 0
      %p67 = por %p65, %p66
      %s68 = ssub.s32 %s30, %s37
      %p69 = scmp.eq.s32.totalorder %s68, 0
      %s71 = sadd.s32 %s70, 1
      %s72 = scalar_select %p69, %s70, %s71
      %p75 = pneg %p69
      %p76 = scmp.eq.s32.totalorder %s22, 3
      %p77 = por %p75, %p76
      %p78 = scmp.ne.s32.totalorder %s70, %s73
      %p79 = scmp.eq.s32.totalorder %s22, 0
      %p80 = por %p78, %p79
      %p81 = scmp.ne.s32.totalorder %s70, %s73
      %p82 = scmp.eq.s32.totalorder %s27, 3
      %p83 = por %p81, %p82
      %p84 = scmp.ne.s32.totalorder %s73, %s74
      %p85 = scmp.eq.s32.totalorder %s27, 0
      %p86 = por %p84, %p85
      %p87 = scmp.ne.s32.totalorder %s73, %s74
      %p88 = scmp.eq.s32.totalorder %s28, 3
      %p89 = por %p87, %p88
      %p91 = scmp.ne.s32.totalorder %s74, %s90
      %p92 = scmp.eq.s32.totalorder %s28, 0
      %p93 = por %p91, %p92
      %s94 = ssub.s32 %s30, %s37
      %p95 = scmp.eq.s32.totalorder %s94, 0
      %s97 = sadd.s32 %s96, 1
      %s98 = scalar_select %p95, %s96, %s97
      %p101 = pneg %p95
      %p102 = scmp.eq.s32.totalorder %s22, 3
      %p103 = por %p101, %p102
      %p104 = scmp.ne.s32.totalorder %s96, %s99
      %p105 = scmp.eq.s32.totalorder %s22, 0
      %p106 = por %p104, %p105
      %p107 = scmp.ne.s32.totalorder %s96, %s99
      %p108 = scmp.eq.s32.totalorder %s27, 3
      %p109 = por %p107, %p108
      %p110 = scmp.ne.s32.totalorder %s99, %s100
      %p111 = scmp.eq.s32.totalorder %s27, 0
      %p112 = por %p110, %p111
      %p113 = scmp.ne.s32.totalorder %s99, %s100
      %p114 = scmp.eq.s32.totalorder %s28, 3
      %p115 = por %p113, %p114
      %p117 = scmp.ne.s32.totalorder %s100, %s116
      %p118 = scmp.eq.s32.totalorder %s28, 0
      %p119 = por %p117, %p118
      %s120 = ssub.s32 %s30, %s37
      %p121 = scmp.eq.s32.totalorder %s120, 0
      %s123 = sadd.s32 %s122, 1
      %s124 = scalar_select %p121, %s122, %s123
      %p127 = pneg %p121
      %p128 = scmp.eq.s32.totalorder %s22, 3
      %p129 = por %p127, %p128
      %p130 = scmp.ne.s32.totalorder %s122, %s125
      %p131 = scmp.eq.s32.totalorder %s22, 0
      %p132 = por %p130, %p131
      %p133 = scmp.ne.s32.totalorder %s122, %s125
      %p134 = scmp.eq.s32.totalorder %s27, 3
      %p135 = por %p133, %p134
      %p136 = scmp.ne.s32.totalorder %s125, %s126
      %p137 = scmp.eq.s32.totalorder %s27, 0
      %p138 = por %p136, %p137
      %p139 = scmp.ne.s32.totalorder %s125, %s126
      %p140 = scmp.eq.s32.totalorder %s28, 3
      %p141 = por %p139, %p140
      %p143 = scmp.ne.s32.totalorder %s126, %s142
      %p144 = scmp.eq.s32.totalorder %s28, 0
      %p145 = por %p143, %p144
      %s146 = ssub.s32 %s30, %s37
      %p147 = scmp.eq.s32.totalorder %s146, 0
      %s149 = sadd.s32 %s148, 1
      %s150 = scalar_select %p147, %s148, %s149
      %p153 = pneg %p147
      %p154 = scmp.eq.s32.totalorder %s22, 3
      %p155 = por %p153, %p154
      %p156 = scmp.ne.s32.totalorder %s148, %s151
      %p157 = scmp.eq.s32.totalorder %s22, 0
      %p158 = por %p156, %p157
      %p159 = scmp.ne.s32.totalorder %s148, %s151
      %p160 = scmp.eq.s32.totalorder %s27, 3
      %p161 = por %p159, %p160
      %p162 = scmp.ne.s32.totalorder %s151, %s152
      %p163 = scmp.eq.s32.totalorder %s27, 0
      %p164 = por %p162, %p163
      %p165 = scmp.ne.s32.totalorder %s151, %s152
      %p166 = scmp.eq.s32.totalorder %s28, 3
      %p167 = por %p165, %p166
      %p169 = scmp.ne.s32.totalorder %s152, %s168
      %p170 = scmp.eq.s32.totalorder %s28, 0
      %p171 = por %p169, %p170
      %s172 = ssub.s32 %s30, %s37
      %p173 = scmp.eq.s32.totalorder %s172, 0
      %s175 = sadd.s32 %s174, 1
      %s176 = scalar_select %p173, %s174, %s175
      %p179 = pneg %p173
      %p180 = scmp.eq.s32.totalorder %s22, 3
      %p181 = por %p179, %p180
      %p182 = scmp.ne.s32.totalorder %s174, %s177
      %p183 = scmp.eq.s32.totalorder %s22, 0
      %p184 = por %p182, %p183
      %p185 = scmp.ne.s32.totalorder %s174, %s177
      %p186 = scmp.eq.s32.totalorder %s27, 3
      %p187 = por %p185, %p186
      %p188 = scmp.ne.s32.totalorder %s177, %s178
      %p189 = scmp.eq.s32.totalorder %s27, 0
      %p190 = por %p188, %p189
      %p191 = scmp.ne.s32.totalorder %s177, %s178
      %p192 = scmp.eq.s32.totalorder %s28, 3
      %p193 = por %p191, %p192
      %p195 = scmp.ne.s32.totalorder %s178, %s194
      %p196 = scmp.eq.s32.totalorder %s28, 0
      %p197 = por %p195, %p196
      %s199 = sadd.s32 %s198, 1
      %p202 = scmp.eq.s32.totalorder %s22, 3
      %p203 = scmp.ne.s32.totalorder %s198, %s200
      %p204 = scmp.eq.s32.totalorder %s22, 0
      %p205 = por %p203, %p204
      %p206 = scmp.ne.s32.totalorder %s198, %s200
      %p207 = scmp.eq.s32.totalorder %s27, 3
      %p208 = por %p206, %p207
      %p209 = scmp.ne.s32.totalorder %s200, %s201
      %p210 = scmp.eq.s32.totalorder %s27, 0
      %p211 = por %p209, %p210
      %p212 = scmp.ne.s32.totalorder %s200, %s201
      %p213 = scmp.eq.s32.totalorder %s28, 3
      %p214 = por %p212, %p213
      %p216 = scmp.ne.s32.totalorder %s201, %s215
      %p217 = scmp.eq.s32.totalorder %s28, 0
      %p218 = por %p216, %p217
      %s219 = ssub.s32 %s29, %s41
      %p220 = scmp.eq.s32.totalorder %s219, 0
      %s222 = sadd.s32 %s221, 1
      %s223 = scalar_select %p220, %s221, %s222
      %p226 = pneg %p220
      %p227 = scmp.eq.s32.totalorder %s22, 3
      %p228 = por %p226, %p227
      %p229 = scmp.ne.s32.totalorder %s221, %s224
      %p230 = scmp.eq.s32.totalorder %s22, 0
      %p231 = por %p229, %p230
      %p232 = scmp.ne.s32.totalorder %s221, %s224
      %p233 = scmp.eq.s32.totalorder %s27, 3
      %p234 = por %p232, %p233
      %p235 = scmp.ne.s32.totalorder %s224, %s225
      %p236 = scmp.eq.s32.totalorder %s27, 0
      %p237 = por %p235, %p236
      %p238 = scmp.ne.s32.totalorder %s224, %s225
      %p239 = scmp.eq.s32.totalorder %s28, 3
      %p240 = por %p238, %p239
      %p242 = scmp.ne.s32.totalorder %s225, %s241
      %p243 = scmp.eq.s32.totalorder %s28, 0
      %p244 = por %p242, %p243
      %p245 = scmp.le.s32.totalorder 1, %s22
      %p246 = scmp.lt.s32.totalorder %s22, 5
      %p247 = pnand %p245, %p246
      %p248 = pneg %p247
      // Predicated region
      $region9: #{tpu_custom_call.1} parent=5 // pred_check
        _
      $region10: #{tpu_custom_call.1} parent=5 // pred_check_branch
        %250 = sbr.rel (%p247) target = $region12
      $region11: #{tpu_custom_call.1} parent=5 // pred_region
        %s251 = ssub.s32 %s22, 1
        // Predicated region
        $region13: #{tpu_custom_call.1} parent=11 // pred_check
          %p252 = pneg %p211
        $region14: #{tpu_custom_call.1} parent=11 // pred_check_branch
          %254 = sbr.rel (%p252) target = $region16
        $region15: #{tpu_custom_call.1} parent=11 // pred_region
          _
        $region16: #{tpu_custom_call.1} parent=11 // pred_fallthru
          _
      $region12: #{tpu_custom_call.1} parent=5 // pred_fallthru
        _
      %p255 = scmp.lt.s32.totalorder %s22, 4
      // Predicated region
      $region17: #{tpu_custom_call.1} parent=5 // pred_check
        %p256 = pneg %p255
      $region18: #{tpu_custom_call.1} parent=5 // pred_check_branch
        %258 = sbr.rel (%p256) target = $region20
      $region19: #{tpu_custom_call.1} parent=5 // pred_region
        // Predicated region
        $region21: #{tpu_custom_call.1} parent=19 // pred_check
          %p259 = pneg %p54
        $region22: #{tpu_custom_call.1} parent=19 // pred_check_branch
          %261 = sbr.rel (%p259) target = $region24
        $region23: #{tpu_custom_call.1} parent=19 // pred_region
          %s262 = sand.u32 %s44, 1
          %s263 = scalar_lea.sflag [#allocation5], %s262
          %s264 = sand.u32 %s44, 1
          %s265 = smul.addr %s264, 8
          %s266 = scalar_lea.vmem [#allocation4], %s265
          %268 = vsyncadd %s263, 0
          %s269 = smul.addr %s29, 8
          %s270 = scalar_lea.hbm %s0, %s269
          %s272 = sshll.u32 %s270, 4
          %s273 = int_to_ptr.hbm [resolvable:$true] %s272
          %s274 = sshll.u32 %s266, 4
          %s275 = int_to_ptr.vmem [resolvable:$true] %s274
          %277 = dma.hbm_to_vmem [thread:$0]  %s273, 128, %s275, %s263
        $region24: #{tpu_custom_call.1} parent=19 // pred_fallthru
          _
        // Predicated region
        $region25: #{tpu_custom_call.1} parent=19 // pred_check
          %p278 = pneg %p80
        $region26: #{tpu_custom_call.1} parent=19 // pred_check_branch
          %280 = sbr.rel (%p278) target = $region28
        $region27: #{tpu_custom_call.1} parent=19 // pred_region
          %p281 = scmp.lt.s32.totalorder %s30, 1
          %s282 = scalar_select %p281, %s30, 1
          %s283 = smul.addr %s282, 4
          %s284 = smul.addr %s283, 4
          %s285 = scalar_lea.vmem %s1, %s284
        $region28: #{tpu_custom_call.1} parent=19 // pred_fallthru
          _
        // Predicated region
        $region29: #{tpu_custom_call.1} parent=19 // pred_check
          %p286 = pneg %p106
        $region30: #{tpu_custom_call.1} parent=19 // pred_check_branch
          %288 = sbr.rel (%p286) target = $region32
        $region31: #{tpu_custom_call.1} parent=19 // pred_region
          %p289 = scmp.lt.s32.totalorder %s30, 1
          %s290 = scalar_select %p289, %s30, 1
          %s291 = smul.addr %s290, 4
          %s292 = smul.addr %s291, 4
          %s293 = scalar_lea.vmem %s2, %s292
        $region32: #{tpu_custom_call.1} parent=19 // pred_fallthru
          _
        // Predicated region
        $region33: #{tpu_custom_call.1} parent=19 // pred_check
          %p294 = pneg %p132
        $region34: #{tpu_custom_call.1} parent=19 // pred_check_branch
          %296 = sbr.rel (%p294) target = $region36
        $region35: #{tpu_custom_call.1} parent=19 // pred_region
          %p297 = scmp.lt.s32.totalorder %s30, 1
          %s298 = scalar_select %p297, %s30, 1
          %s299 = smul.addr %s298, 4
          %s300 = smul.addr %s299, 4
          %s301 = scalar_lea.vmem %s3, %s300
        $region36: #{tpu_custom_call.1} parent=19 // pred_fallthru
          _
        // Predicated region
        $region37: #{tpu_custom_call.1} parent=19 // pred_check
          %p302 = pneg %p158
        $region38: #{tpu_custom_call.1} parent=19 // pred_check_branch
          %304 = sbr.rel (%p302) target = $region40
        $region39: #{tpu_custom_call.1} parent=19 // pred_region
          %p305 = scmp.lt.s32.totalorder %s30, 1
          %s306 = scalar_select %p305, %s30, 1
          %s307 = smul.addr %s306, 8
          %s308 = smul.addr %s307, 4
          %s309 = scalar_lea.vmem %s4, %s308
        $region40: #{tpu_custom_call.1} parent=19 // pred_fallthru
          _
        // Predicated region
        $region41: #{tpu_custom_call.1} parent=19 // pred_check
          %p310 = pneg %p184
        $region42: #{tpu_custom_call.1} parent=19 // pred_check_branch
          %312 = sbr.rel (%p310) target = $region44
        $region43: #{tpu_custom_call.1} parent=19 // pred_region
          %s313 = sand.u32 %s174, 1
          %s314 = scalar_lea.sflag [#allocation8], %s313
          %s315 = sand.u32 %s174, 1
          %s316 = smul.addr %s315, 8
          %s317 = scalar_lea.vmem [#allocation7], %s316
          %319 = vsyncadd %s314, 0
          %s320 = smul.addr %s30, 8
          %s321 = scalar_lea.hbm %s5, %s320
          %s323 = sshll.u32 %s321, 4
          %s324 = int_to_ptr.hbm [resolvable:$true] %s323
          %s325 = sshll.u32 %s317, 4
          %s326 = int_to_ptr.vmem [resolvable:$true] %s325
          %328 = dma.hbm_to_vmem [thread:$0]  %s324, 128, %s326, %s314
        $region44: #{tpu_custom_call.1} parent=19 // pred_fallthru
          _
      $region20: #{tpu_custom_call.1} parent=5 // pred_fallthru
        _
      %p329 = scmp.le.s32.totalorder 1, %s22
      %p330 = scmp.lt.s32.totalorder %s22, 5
      %p331 = pnand %p329, %p330
      %p332 = pneg %p331
      // Predicated region
      $region45: #{tpu_custom_call.1} parent=5 // pred_check
        _
      $region46: #{tpu_custom_call.1} parent=5 // pred_check_branch
        %334 = sbr.rel (%p331) target = $region48
      $region47: #{tpu_custom_call.1} parent=5 // pred_region
        %s335 = ssub.s32 %s22, 1
        %s336 = sand.u32 %s47, 1
        %s337 = scalar_lea.sflag [#allocation5], %s336
        %s338 = sand.u32 %s47, 1
        %s339 = smul.addr %s338, 8
        %s340 = scalar_lea.vmem [#allocation4], %s339
        // Predicated region
        $region49: #{tpu_custom_call.1} parent=47 // pred_check
          %p341 = pneg %p60
        $region50: #{tpu_custom_call.1} parent=47 // pred_check_branch
          %343 = sbr.rel (%p341) target = $region52
        $region51: #{tpu_custom_call.1} parent=47 // pred_region
          %345 = dma.done %s337, 128
        $region52: #{tpu_custom_call.1} parent=47 // pred_fallthru
          _
        %s346 = sand.u32 %s177, 1
        %s347 = scalar_lea.sflag [#allocation8], %s346
        %s348 = sand.u32 %s177, 1
        %s349 = smul.addr %s348, 8
        %s350 = scalar_lea.vmem [#allocation7], %s349
        // Predicated region
        $region53: #{tpu_custom_call.1} parent=47 // pred_check
          %p351 = pneg %p190
        $region54: #{tpu_custom_call.1} parent=47 // pred_check_branch
          %353 = sbr.rel (%p351) target = $region56
        $region55: #{tpu_custom_call.1} parent=47 // pred_region
          %355 = dma.done %s347, 128
        $region56: #{tpu_custom_call.1} parent=47 // pred_fallthru
          _
        %s356 = sand.u32 %s47, 1
        %s357 = scalar_lea.sflag [#allocation5], %s356
        %s358 = sand.u32 %s47, 1
        %s359 = smul.addr %s358, 8
        %s360 = scalar_lea.vmem [#allocation4], %s359
        %p361 = pneg %p60
        %p362 = pneg %p57
        %p363 = scmp.lt.s32.totalorder %s32, 1
        %s364 = scalar_select %p363, %s32, 1
        %s365 = smul.addr %s364, 4
        %s366 = smul.addr %s365, 4
        %s367 = scalar_lea.vmem %s1, %s366
        %p368 = pneg %p86
        %p369 = pneg %p83
        %p370 = scmp.lt.s32.totalorder %s32, 1
        %s371 = scalar_select %p370, %s32, 1
        %s372 = smul.addr %s371, 4
        %s373 = smul.addr %s372, 4
        %s374 = scalar_lea.vmem %s2, %s373
        %p375 = pneg %p112
        %p376 = pneg %p109
        %p377 = scmp.lt.s32.totalorder %s32, 1
        %s378 = scalar_select %p377, %s32, 1
        %s379 = smul.addr %s378, 4
        %s380 = smul.addr %s379, 4
        %s381 = scalar_lea.vmem %s3, %s380
        %p382 = pneg %p138
        %p383 = pneg %p135
        %p384 = scmp.lt.s32.totalorder %s32, 1
        %s385 = scalar_select %p384, %s32, 1
        %s386 = smul.addr %s385, 8
        %s387 = smul.addr %s386, 4
        %s388 = scalar_lea.vmem %s4, %s387
        %p389 = pneg %p164
        %p390 = pneg %p161
        %s391 = sand.u32 %s177, 1
        %s392 = scalar_lea.sflag [#allocation8], %s391
        %s393 = sand.u32 %s177, 1
        %s394 = smul.addr %s393, 8
        %s395 = scalar_lea.vmem [#allocation7], %s394
        %p396 = pneg %p190
        %p397 = pneg %p187
        %p398 = pneg %p211
        %p399 = pneg %p208
        %p400 = pneg %p237
        %p401 = pneg %p234
        %s402 = sand.u32 %s224, 1
        %s403 = scalar_lea.sflag [#allocation6], %s402
        %s404 = sand.u32 %s224, 1
        %s405 = smul.addr %s404, 8
        %s406 = scalar_lea.vmem [#allocation9], %s405
        %p407 = scmp.lt.s32.totalorder %s32, 1
        %s408 = scalar_select %p407, %s32, 1
        %s409 = smul.addr %s408, 4
        %s410 = smul.addr %s409, 4
        %s411 = scalar_lea.vmem %s1, %s410
        %p412 = scmp.lt.s32.totalorder %s32, 1
        %s413 = scalar_select %p412, %s32, 1
        %s414 = smul.addr %s413, 4
        %s415 = smul.addr %s414, 4
        %s416 = scalar_lea.vmem %s2, %s415
        %p417 = scmp.lt.s32.totalorder %s32, 1
        %s418 = scalar_select %p417, %s32, 1
        %s419 = smul.addr %s418, 4
        %s420 = smul.addr %s419, 4
        %s421 = scalar_lea.vmem %s3, %s420
        %p422 = scmp.lt.s32.totalorder %s32, 1
        %s423 = scalar_select %p422, %s32, 1
        %s424 = smul.addr %s423, 8
        %s425 = smul.addr %s424, 4
        %s426 = scalar_lea.vmem %s4, %s425
        %v428 = vld [vmem:[%s350] sm:$0xff]
        %p429 = scmp.eq.s32.totalorder %s32, 0
        // Predicated region
        $region57: #{tpu_custom_call.1} parent=47 // pred_check
          %p430 = pneg %p429
        $region58: #{tpu_custom_call.1} parent=47 // pred_check_branch
          %432 = sbr.rel (%p430) target = $region60
        $region59: #{tpu_custom_call.1} parent=47 // pred_region
          %v433 = vld [vmem:[%s340] sm:$0xff]
          %vm434 = vcmask 261120
          %435 = vst.msk [vmem:[#allocation2] sm:$0xff] %vm434, %v433
        $region60: #{tpu_custom_call.1} parent=47 // pred_fallthru
          _
        %v436 = vld [vmem:[#allocation2] sm:$0xff]
        %v437 = vpack.c.bf16 %v436, %v436
        %v438 = vld [vmem:[%s411] sm:$0xf]
        %v439 = vld [vmem:[%s411 + $0x4] sm:$0xf]
        %v440 = vld [vmem:[%s411 + $0x8] sm:$0xf]
        %v441 = vld [vmem:[%s411 + $0xc] sm:$0xf]
        %v442 = vperm.slane %v428, 0
        %v447 = vunpack.c.l.b16 %v438
        %v448 = vunpack.c.l.b16 %v439
        %v449 = vunpack.c.l.b16 %v440
        %v450 = vunpack.c.l.b16 %v441
        %v451 = vpack.c.b16 %v448, %v447
        %v452 = vpack.c.b16 %v450, %v449
        %vm455 = vcmask 261120
        %v457 = vsel %vm455, %v437, 0
        %459 = vmatpush.bf16.msra.mxu0 0
        %460 = vmatpush.bf16.msra.mxu0 0
        %461 = vmatpush.bf16.msra.mxu0 0
        %462 = vmatpush.bf16.msra.mxu0 0
        %463 = vmatpush.bf16.msra.mxu0 0
        %464 = vmatpush.bf16.msra.mxu0 0
        %465 = vmatpush.bf16.msra.mxu0 %v452
        %466 = vmatpush.bf16.msra.mxu0 %v451
        %467 = vmatmul.bf16.gmra.mxu0 %v457
        %v468 = vpop.f32.mrf.mxu0
        %v469 = vadd.f32 %v442, %v468
        %v470 = vpop.f32.mrf.mxu0
        %471 = vdwg.mxu0
        %v472 = vpack.c.bf16 %v469, %v469
        %v474 = vunpack.c.l.b16 %v472
        %v475 = vpack.c.b16 %v474, %v474
        %476 = vrot.lane.b32.xlu0 %v475, 96
        %v477 = vpop.permute.xlu0 %476
        %vm478 = vcmask 31744
        %v480 = vsel %vm478, %v472, 0
        %v483 = vsel %vm478, %v477, 0
        %485 = vmatpush.bf16.xpose.msra.mxu0 0
        %486 = vmatpush.bf16.xpose.msra.mxu0 0
        %487 = vmatpush.bf16.xpose.msra.mxu0 0
        %488 = vmatpush.bf16.xpose.msra.mxu0 0
        %489 = vmatpush.bf16.xpose.msra.mxu0 0
        %490 = vmatpush.bf16.xpose.msra.mxu0 0
        %491 = vmatpush.bf16.xpose.msra.mxu0 0
        %492 = vmatpush.bf16.xpose.msra.mxu0 %v483
        %493 = vmatmul.bf16.gmra.mxu0 %v480
        %v494 = vpop.f32.mrf.mxu0
        %v495 = vadd.f32 0.0, %v494
        %v496 = vpop.f32.mrf.mxu0
        %497 = vdwg.mxu0
        %vm498 = vcmask 64512
        %v499 = vsel %vm498, %v495, -inf
        %500 = vmax.xlane.f32.xlu0 %v499
        %v501 = vpop.xlane.xlu0 %500
        %v502 = vsub.f32 %v495, %v501
        %v503 = vmul.f32 %v502, 1.442695
        %v504 = vpow.pop %v503
        %v505 = vsel %vm498, %v504, 0.0
        %506 = vadd.xlane.f32.xlu0 %v505
        %v507 = vpop.xlane.xlu0 %506
        %v508 = vrcp.pop %v507
        %v509 = vmul.f32 %v504, %v508
        %v510 = vpack.c.bf16 %v509, %v509
        %511 = vrot.lane.b32.xlu0 %v475, 64
        %v512 = vpop.permute.xlu0 %511
        %v514 = vsel %vm498, %v510, 0
        %vm516 = vcmask 1043456
        %v518 = vsel %vm516, %v512, 0
        %520 = vmatpush.bf16.msra.mxu0 0
        %521 = vmatpush.bf16.msra.mxu0 0
        %522 = vmatpush.bf16.msra.mxu0 0
        %523 = vmatpush.bf16.msra.mxu0 0
        %524 = vmatpush.bf16.msra.mxu0 0
        %525 = vmatpush.bf16.msra.mxu0 0
        %526 = vmatpush.bf16.msra.mxu0 0
        %527 = vmatpush.bf16.msra.mxu0 %v518
        %528 = vmatmul.bf16.gmra.mxu0 %v514
        %v529 = vpop.f32.mrf.mxu0
        %v530 = vadd.f32 0.0, %v529
        %v531 = vpop.f32.mrf.mxu0
        %532 = vdwg.mxu0
        %v533 = vpack.c.bf16 %v530, %v530
        %vm534 = vcmask 27648
        %535 = vst.msk [vmem:[#allocation3] sm:$0xf] %vm534, %v533
        %536 = vrot.lane.b32.xlu0 %v475, 124
        %v537 = vpop.permute.xlu0 %536
        %538 = vrot.lane.b32.xlu0 %v475, 92
        %v539 = vpop.permute.xlu0 %538
        %v541 = vsel %vm478, %v537, 0
        %v544 = vsel %vm478, %v539, 0
        %546 = vmatpush.bf16.xpose.msra.mxu0 0
        %547 = vmatpush.bf16.xpose.msra.mxu0 0
        %548 = vmatpush.bf16.xpose.msra.mxu0 0
        %549 = vmatpush.bf16.xpose.msra.mxu0 0
        %550 = vmatpush.bf16.xpose.msra.mxu0 0
        %551 = vmatpush.bf16.xpose.msra.mxu0 0
        %552 = vmatpush.bf16.xpose.msra.mxu0 0
        %553 = vmatpush.bf16.xpose.msra.mxu0 %v544
        %554 = vmatmul.bf16.gmra.mxu0 %v541
        %v555 = vpop.f32.mrf.mxu0
        %v556 = vadd.f32 0.0, %v555
        %v557 = vpop.f32.mrf.mxu0
        %558 = vdwg.mxu0
        %v559 = vsel %vm498, %v556, -inf
        %560 = vmax.xlane.f32.xlu0 %v559
        %v561 = vpop.xlane.xlu0 %560
        %v562 = vsub.f32 %v556, %v561
        %v563 = vmul.f32 %v562, 1.442695
        %v564 = vpow.pop %v563
        %v565 = vsel %vm498, %v564, 0.0
        %566 = vadd.xlane.f32.xlu0 %v565
        %v567 = vpop.xlane.xlu0 %566
        %v568 = vrcp.pop %v567
        %v569 = vmul.f32 %v564, %v568
        %v570 = vpack.c.bf16 %v569, %v569
        %571 = vrot.lane.b32.xlu0 %v475, 60
        %v572 = vpop.permute.xlu0 %571
        %v574 = vsel %vm498, %v570, 0
        %v577 = vsel %vm516, %v572, 0
        %579 = vmatpush.bf16.msra.mxu0 0
        %580 = vmatpush.bf16.msra.mxu0 0
        %581 = vmatpush.bf16.msra.mxu0 0
        %582 = vmatpush.bf16.msra.mxu0 0
        %583 = vmatpush.bf16.msra.mxu0 0
        %584 = vmatpush.bf16.msra.mxu0 0
        %585 = vmatpush.bf16.msra.mxu0 0
        %586 = vmatpush.bf16.msra.mxu0 %v577
        %587 = vmatmul.bf16.gmra.mxu0 %v574
        %v588 = vpop.f32.mrf.mxu0
        %v589 = vadd.f32 0.0, %v588
        %v590 = vpop.f32.mrf.mxu0
        %591 = vdwg.mxu0
        %v592 = vpack.c.bf16 %v589, %v589
        %594 = vrot.lane.b32.xlu0 %v592, 4
        %v595 = vpop.permute.xlu0 %594
        %vm597 = vcmask 60448
        %598 = vst.msk [vmem:[#allocation3] sm:$0xf] %vm597, %v595
        %599 = vrot.lane.b32.xlu0 %v475, 120
        %v600 = vpop.permute.xlu0 %599
        %601 = vrot.lane.b32.xlu0 %v475, 88
        %v602 = vpop.permute.xlu0 %601
        %v604 = vsel %vm478, %v600, 0
        %v607 = vsel %vm478, %v602, 0
        %609 = vmatpush.bf16.xpose.msra.mxu0 0
        %610 = vmatpush.bf16.xpose.msra.mxu0 0
        %611 = vmatpush.bf16.xpose.msra.mxu0 0
        %612 = vmatpush.bf16.xpose.msra.mxu0 0
        %613 = vmatpush.bf16.xpose.msra.mxu0 0
        %614 = vmatpush.bf16.xpose.msra.mxu0 0
        %615 = vmatpush.bf16.xpose.msra.mxu0 0
        %616 = vmatpush.bf16.xpose.msra.mxu0 %v607
        %617 = vmatmul.bf16.gmra.mxu0 %v604
        %v618 = vpop.f32.mrf.mxu0
        %v619 = vadd.f32 0.0, %v618
        %v620 = vpop.f32.mrf.mxu0
        %621 = vdwg.mxu0
        %v622 = vsel %vm498, %v619, -inf
        %623 = vmax.xlane.f32.xlu0 %v622
        %v624 = vpop.xlane.xlu0 %623
        %v625 = vsub.f32 %v619, %v624
        %v626 = vmul.f32 %v625, 1.442695
        %v627 = vpow.pop %v626
        %v628 = vsel %vm498, %v627, 0.0
        %629 = vadd.xlane.f32.xlu0 %v628
        %v630 = vpop.xlane.xlu0 %629
        %v631 = vrcp.pop %v630
        %v632 = vmul.f32 %v627, %v631
        %v633 = vpack.c.bf16 %v632, %v632
        %634 = vrot.lane.b32.xlu0 %v475, 56
        %v635 = vpop.permute.xlu0 %634
        %v637 = vsel %vm498, %v633, 0
        %v640 = vsel %vm516, %v635, 0
        %642 = vmatpush.bf16.msra.mxu0 0
        %643 = vmatpush.bf16.msra.mxu0 0
        %644 = vmatpush.bf16.msra.mxu0 0
        %645 = vmatpush.bf16.msra.mxu0 0
        %646 = vmatpush.bf16.msra.mxu0 0
        %647 = vmatpush.bf16.msra.mxu0 0
        %648 = vmatpush.bf16.msra.mxu0 0
        %649 = vmatpush.bf16.msra.mxu0 %v640
        %650 = vmatmul.bf16.gmra.mxu0 %v637
        %v651 = vpop.f32.mrf.mxu0
        %v652 = vadd.f32 0.0, %v651
        %v653 = vpop.f32.mrf.mxu0
        %654 = vdwg.mxu0
        %v655 = vpack.c.bf16 %v652, %v652
        %657 = vrot.lane.b32.xlu0 %v655, 8
        %v658 = vpop.permute.xlu0 %657
        %vm660 = vcmask 93248
        %661 = vst.msk [vmem:[#allocation3] sm:$0xf] %vm660, %v658
        %662 = vrot.lane.b32.xlu0 %v475, 116
        %v663 = vpop.permute.xlu0 %662
        %664 = vrot.lane.b32.xlu0 %v475, 84
        %v665 = vpop.permute.xlu0 %664
        %v667 = vsel %vm478, %v663, 0
        %v670 = vsel %vm478, %v665, 0
        %672 = vmatpush.bf16.xpose.msra.mxu0 0
        %673 = vmatpush.bf16.xpose.msra.mxu0 0
        %674 = vmatpush.bf16.xpose.msra.mxu0 0
        %675 = vmatpush.bf16.xpose.msra.mxu0 0
        %676 = vmatpush.bf16.xpose.msra.mxu0 0
        %677 = vmatpush.bf16.xpose.msra.mxu0 0
        %678 = vmatpush.bf16.xpose.msra.mxu0 0
        %679 = vmatpush.bf16.xpose.msra.mxu0 %v670
        %680 = vmatmul.bf16.gmra.mxu0 %v667
        %v681 = vpop.f32.mrf.mxu0
        %v682 = vadd.f32 0.0, %v681
        %v683 = vpop.f32.mrf.mxu0
        %684 = vdwg.mxu0
        %v685 = vsel %vm498, %v682, -inf
        %686 = vmax.xlane.f32.xlu0 %v685
        %v687 = vpop.xlane.xlu0 %686
        %v688 = vsub.f32 %v682, %v687
        %v689 = vmul.f32 %v688, 1.442695
        %v690 = vpow.pop %v689
        %v691 = vsel %vm498, %v690, 0.0
        %692 = vadd.xlane.f32.xlu0 %v691
        %v693 = vpop.xlane.xlu0 %692
        %v694 = vrcp.pop %v693
        %v695 = vmul.f32 %v690, %v694
        %v696 = vpack.c.bf16 %v695, %v695
        %697 = vrot.lane.b32.xlu0 %v475, 52
        %v698 = vpop.permute.xlu0 %697
        %v700 = vsel %vm498, %v696, 0
        %v703 = vsel %vm516, %v698, 0
        %705 = vmatpush.bf16.msra.mxu0 0
        %706 = vmatpush.bf16.msra.mxu0 0
        %707 = vmatpush.bf16.msra.mxu0 0
        %708 = vmatpush.bf16.msra.mxu0 0
        %709 = vmatpush.bf16.msra.mxu0 0
        %710 = vmatpush.bf16.msra.mxu0 0
        %711 = vmatpush.bf16.msra.mxu0 0
        %712 = vmatpush.bf16.msra.mxu0 %v703
        %713 = vmatmul.bf16.gmra.mxu0 %v700
        %v714 = vpop.f32.mrf.mxu0
        %v715 = vadd.f32 0.0, %v714
        %v716 = vpop.f32.mrf.mxu0
        %717 = vdwg.mxu0
        %v718 = vpack.c.bf16 %v715, %v715
        %720 = vrot.lane.b32.xlu0 %v718, 12
        %v721 = vpop.permute.xlu0 %720
        %vm723 = vcmask 126048
        %724 = vst.msk [vmem:[#allocation3] sm:$0xf] %vm723, %v721
        %725 = vrot.lane.b32.xlu0 %v475, 112
        %v726 = vpop.permute.xlu0 %725
        %727 = vrot.lane.b32.xlu0 %v475, 80
        %v728 = vpop.permute.xlu0 %727
        %v730 = vsel %vm478, %v726, 0
        %v733 = vsel %vm478, %v728, 0
        %735 = vmatpush.bf16.xpose.msra.mxu0 0
        %736 = vmatpush.bf16.xpose.msra.mxu0 0
        %737 = vmatpush.bf16.xpose.msra.mxu0 0
        %738 = vmatpush.bf16.xpose.msra.mxu0 0
        %739 = vmatpush.bf16.xpose.msra.mxu0 0
        %740 = vmatpush.bf16.xpose.msra.mxu0 0
        %741 = vmatpush.bf16.xpose.msra.mxu0 0
        %742 = vmatpush.bf16.xpose.msra.mxu0 %v733
        %743 = vmatmul.bf16.gmra.mxu0 %v730
        %v744 = vpop.f32.mrf.mxu0
        %v745 = vadd.f32 0.0, %v744
        %v746 = vpop.f32.mrf.mxu0
        %747 = vdwg.mxu0
        %v748 = vsel %vm498, %v745, -inf
        %749 = vmax.xlane.f32.xlu0 %v748
        %v750 = vpop.xlane.xlu0 %749
        %v751 = vsub.f32 %v745, %v750
        %v752 = vmul.f32 %v751, 1.442695
        %v753 = vpow.pop %v752
        %v754 = vsel %vm498, %v753, 0.0
        %755 = vadd.xlane.f32.xlu0 %v754
        %v756 = vpop.xlane.xlu0 %755
        %v757 = vrcp.pop %v756
        %v758 = vmul.f32 %v753, %v757
        %v759 = vpack.c.bf16 %v758, %v758
        %760 = vrot.lane.b32.xlu0 %v475, 48
        %v761 = vpop.permute.xlu0 %760
        %v763 = vsel %vm498, %v759, 0
        %v766 = vsel %vm516, %v761, 0
        %768 = vmatpush.bf16.msra.mxu0 0
        %769 = vmatpush.bf16.msra.mxu0 0
        %770 = vmatpush.bf16.msra.mxu0 0
        %771 = vmatpush.bf16.msra.mxu0 0
        %772 = vmatpush.bf16.msra.mxu0 0
        %773 = vmatpush.bf16.msra.mxu0 0
        %774 = vmatpush.bf16.msra.mxu0 0
        %775 = vmatpush.bf16.msra.mxu0 %v766
        %776 = vmatmul.bf16.gmra.mxu0 %v763
        %v777 = vpop.f32.mrf.mxu0
        %v778 = vadd.f32 0.0, %v777
        %v779 = vpop.f32.mrf.mxu0
        %780 = vdwg.mxu0
        %v781 = vpack.c.bf16 %v778, %v778
        %783 = vrot.lane.b32.xlu0 %v781, 16
        %v784 = vpop.permute.xlu0 %783
        %vm786 = vcmask 158848
        %787 = vst.msk [vmem:[#allocation3] sm:$0xf] %vm786, %v784
        %788 = vrot.lane.b32.xlu0 %v475, 108
        %v789 = vpop.permute.xlu0 %788
        %790 = vrot.lane.b32.xlu0 %v475, 76
        %v791 = vpop.permute.xlu0 %790
        %v793 = vsel %vm478, %v789, 0
        %v796 = vsel %vm478, %v791, 0
        %798 = vmatpush.bf16.xpose.msra.mxu0 0
        %799 = vmatpush.bf16.xpose.msra.mxu0 0
        %800 = vmatpush.bf16.xpose.msra.mxu0 0
        %801 = vmatpush.bf16.xpose.msra.mxu0 0
        %802 = vmatpush.bf16.xpose.msra.mxu0 0
        %803 = vmatpush.bf16.xpose.msra.mxu0 0
        %804 = vmatpush.bf16.xpose.msra.mxu0 0
        %805 = vmatpush.bf16.xpose.msra.mxu0 %v796
        %806 = vmatmul.bf16.gmra.mxu0 %v793
        %v807 = vpop.f32.mrf.mxu0
        %v808 = vadd.f32 0.0, %v807
        %v809 = vpop.f32.mrf.mxu0
        %810 = vdwg.mxu0
        %v811 = vsel %vm498, %v808, -inf
        %812 = vmax.xlane.f32.xlu0 %v811
        %v813 = vpop.xlane.xlu0 %812
        %v814 = vsub.f32 %v808, %v813
        %v815 = vmul.f32 %v814, 1.442695
        %v816 = vpow.pop %v815
        %v817 = vsel %vm498, %v816, 0.0
        %818 = vadd.xlane.f32.xlu0 %v817
        %v819 = vpop.xlane.xlu0 %818
        %v820 = vrcp.pop %v819
        %v821 = vmul.f32 %v816, %v820
        %v822 = vpack.c.bf16 %v821, %v821
        %823 = vrot.lane.b32.xlu0 %v475, 44
        %v824 = vpop.permute.xlu0 %823
        %v826 = vsel %vm498, %v822, 0
        %v829 = vsel %vm516, %v824, 0
        %831 = vmatpush.bf16.msra.mxu0 0
        %832 = vmatpush.bf16.msra.mxu0 0
        %833 = vmatpush.bf16.msra.mxu0 0
        %834 = vmatpush.bf16.msra.mxu0 0
        %835 = vmatpush.bf16.msra.mxu0 0
        %836 = vmatpush.bf16.msra.mxu0 0
        %837 = vmatpush.bf16.msra.mxu0 0
        %838 = vmatpush.bf16.msra.mxu0 %v829
        %839 = vmatmul.bf16.gmra.mxu0 %v826
        %v840 = vpop.f32.mrf.mxu0
        %v841 = vadd.f32 0.0, %v840
        %v842 = vpop.f32.mrf.mxu0
        %843 = vdwg.mxu0
        %v844 = vpack.c.bf16 %v841, %v841
        %846 = vrot.lane.b32.xlu0 %v844, 20
        %v847 = vpop.permute.xlu0 %846
        %vm849 = vcmask 191648
        %850 = vst.msk [vmem:[#allocation3] sm:$0xf] %vm849, %v847
        %851 = vrot.lane.b32.xlu0 %v475, 104
        %v852 = vpop.permute.xlu0 %851
        %853 = vrot.lane.b32.xlu0 %v475, 72
        %v854 = vpop.permute.xlu0 %853
        %v856 = vsel %vm478, %v852, 0
        %v859 = vsel %vm478, %v854, 0
        %861 = vmatpush.bf16.xpose.msra.mxu0 0
        %862 = vmatpush.bf16.xpose.msra.mxu0 0
        %863 = vmatpush.bf16.xpose.msra.mxu0 0
        %864 = vmatpush.bf16.xpose.msra.mxu0 0
        %865 = vmatpush.bf16.xpose.msra.mxu0 0
        %866 = vmatpush.bf16.xpose.msra.mxu0 0
        %867 = vmatpush.bf16.xpose.msra.mxu0 0
        %868 = vmatpush.bf16.xpose.msra.mxu0 %v859
        %869 = vmatmul.bf16.gmra.mxu0 %v856
        %v870 = vpop.f32.mrf.mxu0
        %v871 = vadd.f32 0.0, %v870
        %v872 = vpop.f32.mrf.mxu0
        %873 = vdwg.mxu0
        %v874 = vsel %vm498, %v871, -inf
        %875 = vmax.xlane.f32.xlu0 %v874
        %v876 = vpop.xlane.xlu0 %875
        %v877 = vsub.f32 %v871, %v876
        %v878 = vmul.f32 %v877, 1.442695
        %v879 = vpow.pop %v878
        %v880 = vsel %vm498, %v879, 0.0
        %881 = vadd.xlane.f32.xlu0 %v880
        %v882 = vpop.xlane.xlu0 %881
        %v883 = vrcp.pop %v882
        %v884 = vmul.f32 %v879, %v883
        %v885 = vpack.c.bf16 %v884, %v884
        %886 = vrot.lane.b32.xlu0 %v475, 40
        %v887 = vpop.permute.xlu0 %886
        %v889 = vsel %vm498, %v885, 0
        %v892 = vsel %vm516, %v887, 0
        %894 = vmatpush.bf16.msra.mxu0 0
        %895 = vmatpush.bf16.msra.mxu0 0
        %896 = vmatpush.bf16.msra.mxu0 0
        %897 = vmatpush.bf16.msra.mxu0 0
        %898 = vmatpush.bf16.msra.mxu0 0
        %899 = vmatpush.bf16.msra.mxu0 0
        %900 = vmatpush.bf16.msra.mxu0 0
        %901 = vmatpush.bf16.msra.mxu0 %v892
        %902 = vmatmul.bf16.gmra.mxu0 %v889
        %v903 = vpop.f32.mrf.mxu0
        %v904 = vadd.f32 0.0, %v903
        %v905 = vpop.f32.mrf.mxu0
        %906 = vdwg.mxu0
        %v907 = vpack.c.bf16 %v904, %v904
        %909 = vrot.lane.b32.xlu0 %v907, 24
        %v910 = vpop.permute.xlu0 %909
        %vm912 = vcmask 224448
        %913 = vst.msk [vmem:[#allocation3] sm:$0xf] %vm912, %v910
        %914 = vrot.lane.b32.xlu0 %v475, 100
        %v915 = vpop.permute.xlu0 %914
        %916 = vrot.lane.b32.xlu0 %v475, 68
        %v917 = vpop.permute.xlu0 %916
        %v919 = vsel %vm478, %v915, 0
        %v922 = vsel %vm478, %v917, 0
        %924 = vmatpush.bf16.xpose.msra.mxu0 0
        %925 = vmatpush.bf16.xpose.msra.mxu0 0
        %926 = vmatpush.bf16.xpose.msra.mxu0 0
        %927 = vmatpush.bf16.xpose.msra.mxu0 0
        %928 = vmatpush.bf16.xpose.msra.mxu0 0
        %929 = vmatpush.bf16.xpose.msra.mxu0 0
        %930 = vmatpush.bf16.xpose.msra.mxu0 0
        %931 = vmatpush.bf16.xpose.msra.mxu0 %v922
        %932 = vmatmul.bf16.gmra.mxu0 %v919
        %v933 = vpop.f32.mrf.mxu0
        %v934 = vadd.f32 0.0, %v933
        %v935 = vpop.f32.mrf.mxu0
        %936 = vdwg.mxu0
        %v937 = vsel %vm498, %v934, -inf
        %938 = vmax.xlane.f32.xlu0 %v937
        %v939 = vpop.xlane.xlu0 %938
        %v940 = vsub.f32 %v934, %v939
        %v941 = vmul.f32 %v940, 1.442695
        %v942 = vpow.pop %v941
        %v943 = vsel %vm498, %v942, 0.0
        %944 = vadd.xlane.f32.xlu0 %v943
        %v945 = vpop.xlane.xlu0 %944
        %v946 = vrcp.pop %v945
        %v947 = vmul.f32 %v942, %v946
        %v948 = vpack.c.bf16 %v947, %v947
        %949 = vrot.lane.b32.xlu0 %v475, 36
        %v950 = vpop.permute.xlu0 %949
        %v952 = vsel %vm498, %v948, 0
        %v955 = vsel %vm516, %v950, 0
        %957 = vmatpush.bf16.msra.mxu0 0
        %958 = vmatpush.bf16.msra.mxu0 0
        %959 = vmatpush.bf16.msra.mxu0 0
        %960 = vmatpush.bf16.msra.mxu0 0
        %961 = vmatpush.bf16.msra.mxu0 0
        %962 = vmatpush.bf16.msra.mxu0 0
        %963 = vmatpush.bf16.msra.mxu0 0
        %964 = vmatpush.bf16.msra.mxu0 %v955
        %965 = vmatmul.bf16.gmra.mxu0 %v952
        %v966 = vpop.f32.mrf.mxu0
        %v967 = vadd.f32 0.0, %v966
        %v968 = vpop.f32.mrf.mxu0
        %969 = vdwg.mxu0
        %v970 = vpack.c.bf16 %v967, %v967
        %972 = vrot.lane.b32.xlu0 %v970, 28
        %v973 = vpop.permute.xlu0 %972
        %vm975 = vcmask 257248
        %976 = vst.msk [vmem:[#allocation3] sm:$0xf] %vm975, %v973
        %v977 = vld [vmem:[#allocation3] sm:$0xf]
        %v978 = vld [vmem:[%s416] sm:$0xf]
        %v979 = vld [vmem:[%s416 + $0x4] sm:$0xf]
        %v980 = vld [vmem:[%s416 + $0x8] sm:$0xf]
        %v981 = vld [vmem:[%s416 + $0xc] sm:$0xf]
        %v982 = vperm.slane %v428, 1
        %v987 = vunpack.c.l.b16 %v978
        %v988 = vunpack.c.l.b16 %v979
        %v989 = vunpack.c.l.b16 %v980
        %v990 = vunpack.c.l.b16 %v981
        %v991 = vpack.c.b16 %v988, %v987
        %v992 = vpack.c.b16 %v990, %v989
        %v996 = vsel %vm455, %v977, 0
        %998 = vmatpush.bf16.msra.mxu0 0
        %999 = vmatpush.bf16.msra.mxu0 0
        %1000 = vmatpush.bf16.msra.mxu0 0
        %1001 = vmatpush.bf16.msra.mxu0 0
        %1002 = vmatpush.bf16.msra.mxu0 0
        %1003 = vmatpush.bf16.msra.mxu0 0
        %1004 = vmatpush.bf16.msra.mxu0 %v992
        %1005 = vmatpush.bf16.msra.mxu0 %v991
        %1006 = vmatmul.bf16.gmra.mxu0 %v996
        %v1007 = vpop.f32.mrf.mxu0
        %v1008 = vadd.f32 %v982, %v1007
        %v1009 = vpop.f32.mrf.mxu0
        %1010 = vdwg.mxu0
        %v1011 = vadd.f32 %v436, %v1008
        %v1012 = vsel %vm455, %v1011, 0.0
        %1013 = vadd.xlane.f32.xlu0 %v1012
        %v1014 = vpop.xlane.xlu0 %1013
        %v1015 = vrcp.pop 32.0
        %v1016 = vmul.f32 32.0, %v1015
        %v1017 = vsub.f32 1.0, %v1016
        %v1018 = vmul.f32 %v1015, %v1017
        %v1019 = vadd.f32 %v1015, %v1018
        %vm1020 = vweird.f32 %v1015
        %v1021 = vsel %vm1020, %v1015, %v1019
        %v1022 = vmul.f32 %v1014, %v1021
        %v1023 = vsub.f32 %v1011, %v1022
        %v1024 = vmul.f32 %v1023, %v1023
        %v1025 = vsel %vm455, %v1024, 0.0
        %1026 = vadd.xlane.f32.xlu0 %v1025
        %v1027 = vpop.xlane.xlu0 %1026
        %v1028 = vmul.f32 %v1027, %v1021
        %v1029 = vadd.f32 %v1028, 1e-05
        %v1030 = vrsqrt.pop %v1029
        %v1031 = vmul.f32 %v1030, %v1029
        %v1032 = vmul.f32 %v1031, %v1030
        %v1033 = vmul.f32 0.5, %v1032
        %v1034 = vsub.f32 1.5, %v1033
        %v1035 = vmul.f32 %v1030, %v1034
        %vm1036 = vweird.f32 %v1029
        %vm1037 = vweird.f32 %v1030
        %vm1038 = vmor %vm1036, %vm1037
        %v1039 = vsel %vm1038, %v1030, %v1035
        %v1040 = vmul.f32 %v1023, %v1039
        %v1041 = vperm.slane %v428, 2
        %v1042 = vmul.f32 %v1040, %v1041
        %v1043 = vperm.slane %v428, 3
        %v1044 = vadd.f32 %v1042, %v1043
        %v1045 = vpack.c.bf16 %v1044, %v1044
        %v1046 = vld [vmem:[%s421] sm:$0xf]
        %v1047 = vld [vmem:[%s421 + $0x4] sm:$0xf]
        %v1048 = vld [vmem:[%s421 + $0x8] sm:$0xf]
        %v1049 = vld [vmem:[%s421 + $0xc] sm:$0xf]
        %v1050 = vperm.slane %v428, 4
        %v1055 = vunpack.c.l.b16 %v1046
        %v1056 = vunpack.c.l.b16 %v1047
        %v1057 = vunpack.c.l.b16 %v1048
        %v1058 = vunpack.c.l.b16 %v1049
        %v1059 = vpack.c.b16 %v1056, %v1055
        %v1060 = vpack.c.b16 %v1058, %v1057
        %v1064 = vsel %vm455, %v1045, 0
        %1066 = vmatpush.bf16.msra.mxu0 0
        %1067 = vmatpush.bf16.msra.mxu0 0
        %1068 = vmatpush.bf16.msra.mxu0 0
        %1069 = vmatpush.bf16.msra.mxu0 0
        %1070 = vmatpush.bf16.msra.mxu0 0
        %1071 = vmatpush.bf16.msra.mxu0 0
        %1072 = vmatpush.bf16.msra.mxu0 %v1060
        %1073 = vmatpush.bf16.msra.mxu0 %v1059
        %1074 = vmatmul.bf16.gmra.mxu0 %v1064
        %v1075 = vpop.f32.mrf.mxu0
        %v1076 = vadd.f32 %v1050, %v1075
        %v1077 = vpop.f32.mrf.mxu0
        %1078 = vdwg.mxu0
        %v1079 = vmax.f32 %v1076, 0.0
        %v1080 = vpack.c.bf16 %v1079, %v1079
        %v1081 = vld [vmem:[%s426] sm:$0xf]
        %v1082 = vld [vmem:[%s426 + $0x4] sm:$0xf]
        %v1083 = vld [vmem:[%s426 + $0x8] sm:$0xf]
        %v1084 = vld [vmem:[%s426 + $0xc] sm:$0xf]
        %v1085 = vld [vmem:[%s426 + $0x10] sm:$0xf]
        %v1086 = vld [vmem:[%s426 + $0x14] sm:$0xf]
        %v1087 = vld [vmem:[%s426 + $0x18] sm:$0xf]
        %v1088 = vld [vmem:[%s426 + $0x1c] sm:$0xf]
        %v1089 = vperm.slane %v428, 5
        %v1098 = vunpack.c.l.b16 %v1081
        %v1099 = vunpack.c.l.b16 %v1082
        %v1100 = vunpack.c.l.b16 %v1083
        %v1101 = vunpack.c.l.b16 %v1084
        %v1102 = vunpack.c.l.b16 %v1085
        %v1103 = vunpack.c.l.b16 %v1086
        %v1104 = vunpack.c.l.b16 %v1087
        %v1105 = vunpack.c.l.b16 %v1088
        %v1106 = vpack.c.b16 %v1099, %v1098
        %v1107 = vpack.c.b16 %v1101, %v1100
        %v1108 = vpack.c.b16 %v1103, %v1102
        %v1109 = vpack.c.b16 %v1105, %v1104
        %vm1114 = vcmask 523264
        %v1116 = vsel %vm1114, %v1080, 0
        %1118 = vmatpush.bf16.msra.mxu0 0
        %1119 = vmatpush.bf16.msra.mxu0 0
        %1120 = vmatpush.bf16.msra.mxu0 0
        %1121 = vmatpush.bf16.msra.mxu0 0
        %1122 = vmatpush.bf16.msra.mxu0 %v1109
        %1123 = vmatpush.bf16.msra.mxu0 %v1108
        %1124 = vmatpush.bf16.msra.mxu0 %v1107
        %1125 = vmatpush.bf16.msra.mxu0 %v1106
        %1126 = vmatmul.bf16.gmra.mxu0 %v1116
        %v1127 = vpop.f32.mrf.mxu0
        %v1128 = vadd.f32 %v1089, %v1127
        %v1129 = vpop.f32.mrf.mxu0
        %1130 = vdwg.mxu0
        %v1131 = vadd.f32 %v1044, %v1128
        %v1132 = vsel %vm455, %v1131, 0.0
        %1133 = vadd.xlane.f32.xlu0 %v1132
        %v1134 = vpop.xlane.xlu0 %1133
        %v1135 = vmul.f32 %v1134, %v1021
        %v1136 = vsub.f32 %v1131, %v1135
        %v1137 = vmul.f32 %v1136, %v1136
        %v1138 = vsel %vm455, %v1137, 0.0
        %1139 = vadd.xlane.f32.xlu0 %v1138
        %v1140 = vpop.xlane.xlu0 %1139
        %v1141 = vmul.f32 %v1140, %v1021
        %v1142 = vadd.f32 %v1141, 1e-05
        %v1143 = vrsqrt.pop %v1142
        %v1144 = vmul.f32 %v1143, %v1142
        %v1145 = vmul.f32 %v1144, %v1143
        %v1146 = vmul.f32 0.5, %v1145
        %v1147 = vsub.f32 1.5, %v1146
        %v1148 = vmul.f32 %v1143, %v1147
        %vm1149 = vweird.f32 %v1142
        %vm1150 = vweird.f32 %v1143
        %vm1151 = vmor %vm1149, %vm1150
        %v1152 = vsel %vm1151, %v1143, %v1148
        %v1153 = vmul.f32 %v1136, %v1152
        %v1154 = vperm.slane %v428, 6
        %v1155 = vmul.f32 %v1153, %v1154
        %v1156 = vperm.slane %v428, 7
        %v1157 = vadd.f32 %v1155, %v1156
        %1158 = vst.msk [vmem:[#allocation2] sm:$0xff] %vm455, %v1157
        %p1159 = scmp.eq.s32.totalorder %s32, 1
        // Predicated region
        $region61: #{tpu_custom_call.1} parent=47 // pred_check
          %p1160 = pneg %p1159
        $region62: #{tpu_custom_call.1} parent=47 // pred_check_branch
          %1162 = sbr.rel (%p1160) target = $region64
        $region63: #{tpu_custom_call.1} parent=47 // pred_region
          %v1163 = vld [vmem:[%s6] sm:$0x1]
          %v1164 = vld [vmem:[%s6 + $0x1] sm:$0x1]
          %v1165 = vsel %vm455, %v1157, 0.0
          %1166 = vadd.xlane.f32.xlu0 %v1165
          %v1167 = vpop.xlane.xlu0 %1166
          %v1168 = vmul.f32 %v1167, %v1021
          %v1169 = vsub.f32 %v1157, %v1168
          %v1170 = vmul.f32 %v1169, %v1169
          %v1171 = vsel %vm455, %v1170, 0.0
          %1172 = vadd.xlane.f32.xlu0 %v1171
          %v1173 = vpop.xlane.xlu0 %1172
          %v1174 = vmul.f32 %v1173, %v1021
          %v1175 = vadd.f32 %v1174, 1e-05
          %v1176 = vrsqrt.pop %v1175
          %v1177 = vmul.f32 %v1176, %v1175
          %v1178 = vmul.f32 %v1177, %v1176
          %v1179 = vmul.f32 0.5, %v1178
          %v1180 = vsub.f32 1.5, %v1179
          %v1181 = vmul.f32 %v1176, %v1180
          %vm1182 = vweird.f32 %v1175
          %vm1183 = vweird.f32 %v1176
          %vm1184 = vmor %vm1182, %vm1183
          %v1185 = vsel %vm1184, %v1176, %v1181
          %v1186 = vmul.f32 %v1169, %v1185
          %v1187 = vperm.slane %v1163, 0
          %v1188 = vmul.f32 %v1186, %v1187
          %v1189 = vperm.slane %v1164, 0
          %v1190 = vadd.f32 %v1188, %v1189
          %1191 = vst.msk [vmem:[%s406] sm:$0xff] %vm455, %v1190
        $region64: #{tpu_custom_call.1} parent=47 // pred_fallthru
          _
        %s1192 = sand.u32 %s224, 1
        %s1193 = scalar_lea.sflag [#allocation6], %s1192
        %s1194 = sand.u32 %s224, 1
        %s1195 = smul.addr %s1194, 8
        %s1196 = scalar_lea.vmem [#allocation9], %s1195
        // Predicated region
        $region65: #{tpu_custom_call.1} parent=47 // pred_check
          %p1197 = pneg %p234
        $region66: #{tpu_custom_call.1} parent=47 // pred_check_branch
          %1199 = sbr.rel (%p1197) target = $region68
        $region67: #{tpu_custom_call.1} parent=47 // pred_region
          %1201 = vsyncadd %s1193, 0
          %s1202 = smul.addr %s31, 8
          %s1203 = scalar_lea.hbm %s7, %s1202
          %s1205 = sshll.u32 %s1196, 4
          %s1206 = int_to_ptr.vmem [resolvable:$true] %s1205
          %s1207 = sshll.u32 %s1203, 4
          %s1208 = int_to_ptr.hbm [resolvable:$true] %s1207
          %1210 = dma.vmem_to_hbm [thread:$0]  %s1206, 128, %s1208, %s1193
        $region68: #{tpu_custom_call.1} parent=47 // pred_fallthru
          _
      $region48: #{tpu_custom_call.1} parent=5 // pred_fallthru
        _
      %p1211 = scmp.le.s32.totalorder 2, %s22
      // Predicated region
      $region69: #{tpu_custom_call.1} parent=5 // pred_check
        %p1212 = pneg %p1211
      $region70: #{tpu_custom_call.1} parent=5 // pred_check_branch
        %1214 = sbr.rel (%p1212) target = $region72
      $region71: #{tpu_custom_call.1} parent=5 // pred_region
        %s1215 = ssub.s32 %s22, 2
        // Predicated region
        $region73: #{tpu_custom_call.1} parent=71 // pred_check
          %p1216 = pneg %p240
        $region74: #{tpu_custom_call.1} parent=71 // pred_check_branch
          %1218 = sbr.rel (%p1216) target = $region76
        $region75: #{tpu_custom_call.1} parent=71 // pred_region
          %s1219 = sand.u32 %s225, 1
          %s1220 = scalar_lea.sflag [#allocation6], %s1219
          %s1221 = sand.u32 %s225, 1
          %s1222 = smul.addr %s1221, 8
          %s1223 = scalar_lea.vmem [#allocation9], %s1222
          %1225 = dma.done %s1220, 128
        $region76: #{tpu_custom_call.1} parent=71 // pred_fallthru
          _
      $region72: #{tpu_custom_call.1} parent=5 // pred_fallthru
        _
    $region6: #{tpu_custom_call.1} parent=1 // loop_footer
      %s26 = sadd.s32 1, %s22
    $region7: #{tpu_custom_call.1} parent=1 // loop_footer_branch
      %21 = sbr.rel target = $region3
    $region8: #{tpu_custom_call.1} parent=1 // loop_exit
      _
    %1226 = vsyncpa [#allocation5], 1
    %s1227 = scalar_lea.sflag [#allocation5], 1
    %1228 = vsyncpa %s1227, 1
    %1229 = vsyncpa [#allocation8], 1
    %s1230 = scalar_lea.sflag [#allocation8], 1
    %1231 = vsyncpa %s1230, 1
    %1232 = vsyncpa [#allocation6], 1
    %s1233 = scalar_lea.sflag [#allocation6], 1
    %1234 = vsyncpa %s1233, 1

</llo_original>
